<compile_context>
chip_gen: v7x
topology: tpu7x:2x2x1
jax: 0.10.0
libtpu: 0.0.40
codegen_flags: <defaults>
</compile_context>

<pallas_src>
import math
import functools

import jax
import jax.numpy as jnp
from jax.experimental import pallas as pl
from jax.experimental.pallas import tpu as pltpu


def _encoder_layer_kernel(
    x_ref, pos_ref,
    wq_ref, bq_ref, wk_ref, bk_ref, wv_ref, bv_ref,
    wo_ref, bo_ref,
    w1_ref, b1_ref, w2_ref, b2_ref,
    g1_ref, be1_ref, g2_ref, be2_ref,
    o_ref,
    k_scr, v_scr,
    *, nhead: int, q_tile: int, eps: float = 1e-5,
):
    L, E = x_ref.shape
    hd = E // nhead
    qt = pl.program_id(1)

    # ---- K / V projections: once per batch element, kept in persistent VMEM scratch.
    @pl.when(qt == 0)
    def _():
        x_full = x_ref[...].astype(jnp.float32)                       # (L, E)
        qk_full = (x_full + pos_ref[...].astype(jnp.float32)).astype(jnp.bfloat16)
        k = jnp.dot(qk_full, wk_ref[...],
                    preferred_element_type=jnp.float32) + bk_ref[...]
        v = jnp.dot(x_full.astype(jnp.bfloat16), wv_ref[...],
                    preferred_element_type=jnp.float32) + bv_ref[...]
        k_scr[...] = k.astype(k_scr.dtype)
        v_scr[...] = v.astype(v_scr.dtype)

    # ---- current query tile
    q0 = pl.multiple_of(qt * q_tile, q_tile)
    x_t = x_ref[pl.ds(q0, q_tile), :].astype(jnp.float32)             # (TQ, E) residual
    qk_t = (x_t + pos_ref[pl.ds(q0, q_tile), :].astype(jnp.float32)).astype(jnp.bfloat16)

    # Q projection (1/sqrt(hd) already folded into wq / bq).
    Q = jnp.dot(qk_t, wq_ref[...], preferred_element_type=jnp.float32) + bq_ref[...]
    Qb = Q.astype(jnp.bfloat16)                                        # (TQ, E)

    K = k_scr[...]                                                     # (L, E) bf16
    V = v_scr[...]                                                     # (L, E) bf16

    # ---- multi-head attention, output projection fused into per-head accumulation.
    attn = jnp.zeros((q_tile, E), jnp.float32) + bo_ref[...]
    for h in range(nhead):
        sl = slice(h * hd, (h + 1) * hd)
        s = jnp.einsum("qd,kd->qk", Qb[:, sl], K[:, sl],
                       preferred_element_type=jnp.float32)             # (TQ, L)
        s = s - jnp.max(s, axis=-1, keepdims=True)
        p = jnp.exp(s)
        p = p * pl.reciprocal(jnp.sum(p, axis=-1, keepdims=True), approx=True)
        o_h = jnp.dot(p.astype(jnp.bfloat16), V[:, sl],
                      preferred_element_type=jnp.float32)              # (TQ, hd)
        attn = attn + jnp.dot(o_h.astype(jnp.bfloat16), wo_ref[sl, :],
                              preferred_element_type=jnp.float32)      # (TQ, E)

    # ---- residual + LayerNorm 1 (fp32 statistics)
    y = x_t + attn
    mu = jnp.mean(y, axis=-1, keepdims=True)
    var = jnp.mean(jnp.square(y - mu), axis=-1, keepdims=True)
    y = (y - mu) * jax.lax.rsqrt(var + eps) * g1_ref[...] + be1_ref[...]

    # ---- feed-forward: linear2(relu(linear1(y)))
    h1 = jnp.dot(y.astype(jnp.bfloat16), w1_ref[...],
                 preferred_element_type=jnp.float32) + b1_ref[...]
    h1 = jnp.maximum(h1, 0.0)
    h2 = jnp.dot(h1.astype(jnp.bfloat16), w2_ref[...],
                 preferred_element_type=jnp.float32) + b2_ref[...]

    # ---- residual + LayerNorm 2
    z = y + h2
    mu2 = jnp.mean(z, axis=-1, keepdims=True)
    var2 = jnp.mean(jnp.square(z - mu2), axis=-1, keepdims=True)
    z = (z - mu2) * jax.lax.rsqrt(var2 + eps) * g2_ref[...] + be2_ref[...]

    o_ref[...] = z.astype(o_ref.dtype)


def _prepare_kernel_params(p, nhead):
    """Cast matmul weights to bf16 and fold the attention scale into wq/bq."""
    E = p["wq"].shape[0]
    hd = E // nhead
    scale = 1.0 / math.sqrt(hd)
    wdt = jnp.bfloat16
    return {
        "wq": (p["wq"] * scale).astype(wdt), "bq": (p["bq"] * scale).astype(jnp.float32),
        "wk": p["wk"].astype(wdt), "bk": p["bk"].astype(jnp.float32),
        "wv": p["wv"].astype(wdt), "bv": p["bv"].astype(jnp.float32),
        "wo": p["wo"].astype(wdt), "bo": p["bo"].astype(jnp.float32),
        "w1": p["w1"].astype(wdt), "b1": p["b1"].astype(jnp.float32),
        "w2": p["w2"].astype(wdt), "b2": p["b2"].astype(jnp.float32),
        "g1": p["g1"].astype(jnp.float32), "be1": p["be1"].astype(jnp.float32),
        "g2": p["g2"].astype(jnp.float32), "be2": p["be2"].astype(jnp.float32),
    }


def transformer_encoder_layer_batch_major(x, pos, params, *, nhead, q_tile=None):
    """x, pos: (N, L, E) batch-major.  Returns (N, L, E)."""
    N, L, E = x.shape
    assert E % nhead == 0, "d_model must be divisible by nhead"
    dff = params["w1"].shape[1]

    TQ = L if q_tile is None else min(q_tile, L)
    assert L % TQ == 0 and (TQ % 8 == 0 or TQ == L), "q_tile must divide L (multiple of 8)"

    kp = _prepare_kernel_params(params, nhead)

    full_seq = pl.BlockSpec((None, L, E), lambda b, qt: (b, 0, 0))
    out_spec = pl.BlockSpec((None, TQ, E), lambda b, qt: (b, qt, 0))
    mat = lambda r, c: pl.BlockSpec((r, c), lambda b, qt: (0, 0))

    kernel = functools.partial(_encoder_layer_kernel, nhead=nhead, q_tile=TQ)

    out = pl.pallas_call(
        kernel,
        out_shape=jax.ShapeDtypeStruct((N, L, E), x.dtype),
        grid_spec=pltpu.PrefetchScalarGridSpec(
            num_scalar_prefetch=0,
            grid=(N, L // TQ),
            in_specs=[
                full_seq, full_seq,              # x, pos (full sequence per batch)
                mat(E, E), mat(1, E),            # wq (scaled, bf16), bq (scaled)
                mat(E, E), mat(1, E),            # wk, bk
                mat(E, E), mat(1, E),            # wv, bv
                mat(E, E), mat(1, E),            # wo, bo
                mat(E, dff), mat(1, dff),        # w1, b1
                mat(dff, E), mat(1, E),          # w2, b2
                mat(1, E), mat(1, E),            # gamma1, beta1
                mat(1, E), mat(1, E),            # gamma2, beta2
            ],
            out_specs=out_spec,
            scratch_shapes=[
                pltpu.VMEM((L, E), jnp.bfloat16),   # K, persists across query tiles
                pltpu.VMEM((L, E), jnp.bfloat16),   # V
            ],
        ),
        compiler_params=pltpu.CompilerParams(
            dimension_semantics=("parallel", "arbitrary"),
            vmem_limit_bytes=64 * 1024 * 1024,
        ),
    )(
        x, pos,
        kp["wq"], kp["bq"], kp["wk"], kp["bk"], kp["wv"], kp["bv"],
        kp["wo"], kp["bo"],
        kp["w1"], kp["b1"], kp["w2"], kp["b2"],
        kp["g1"], kp["be1"], kp["g2"], kp["be2"],
    )
    return out


def transformer_encoder_layer(src, pos, params, *, nhead, q_tile=None):
    """PyTorch-parity entry point. src, pos: (L, N, E) -> (L, N, E).

    Prefer `transformer_encoder_layer_batch_major` when the caller already holds
    (N, L, E) data to avoid the two full-tensor HBM transposes.
    """
    x = jnp.transpose(src, (1, 0, 2))   # (N, L, E)
    p = jnp.transpose(pos, (1, 0, 2))
    out = transformer_encoder_layer_batch_major(x, p, params, nhead=nhead, q_tile=q_tile)
    return jnp.transpose(out, (1, 0, 2))


def _xavier_uniform(key, shape):
    fan_out, fan_in = shape
    limit = math.sqrt(6.0 / (fan_in + fan_out))
    return jax.random.uniform(key, shape, jnp.float32, -limit, limit)


def init_params(key, d_model, nhead, dim_feedforward):
    ks = jax.random.split(key, 8)
    # nn.MultiheadAttention: in_proj_weight (3E, E) xavier_uniform, in_proj_bias zeros(3E)
    in_proj = _xavier_uniform(ks[0], (3 * d_model, d_model))
    wq_t, wk_t, wv_t = jnp.split(in_proj, 3, axis=0)           # each (E, E), y = x @ W^T
    wo_t = _xavier_uniform(ks[1], (d_model, d_model))           # out_proj.weight
    w1_t = _xavier_uniform(ks[2], (dim_feedforward, d_model))   # linear1.weight
    w2_t = _xavier_uniform(ks[3], (d_model, dim_feedforward))   # linear2.weight
    b1 = jax.random.uniform(ks[4], (dim_feedforward,), jnp.float32,
                            -1 / math.sqrt(d_model), 1 / math.sqrt(d_model))
    b2 = jax.random.uniform(ks[5], (d_model,), jnp.float32,
                            -1 / math.sqrt(dim_feedforward), 1 / math.sqrt(dim_feedforward))
    return {
        # pre-transposed so forward computes y = x @ W + b (fp32 master copy)
        "wq": wq_t.T, "wk": wk_t.T, "wv": wv_t.T,
        "bq": jnp.zeros((1, d_model), jnp.float32),
        "bk": jnp.zeros((1, d_model), jnp.float32),
        "bv": jnp.zeros((1, d_model), jnp.float32),
        "wo": wo_t.T, "bo": jnp.zeros((1, d_model), jnp.float32),
        "w1": w1_t.T, "b1": b1.reshape(1, -1),
        "w2": w2_t.T, "b2": b2.reshape(1, -1),
        "g1": jnp.ones((1, d_model), jnp.float32),
        "be1": jnp.zeros((1, d_model), jnp.float32),
        "g2": jnp.ones((1, d_model), jnp.float32),
        "be2": jnp.zeros((1, d_model), jnp.float32),
    }


def _reference(src, pos, params, nhead):
    """Pure-JAX fp32 reference of forward_post (eval mode)."""
    L, N, E = src.shape
    hd = E // nhead
    x = jnp.transpose(src, (1, 0, 2))
    p = jnp.transpose(pos, (1, 0, 2))
    qk = x + p
    Q = qk @ params["wq"] + params["bq"]
    K = qk @ params["wk"] + params["bk"]
    V = x @ params["wv"] + params["bv"]
    Qh = Q.reshape(N, L, nhead, hd).transpose(0, 2, 1, 3)
    Kh = K.reshape(N, L, nhead, hd).transpose(0, 2, 1, 3)
    Vh = V.reshape(N, L, nhead, hd).transpose(0, 2, 1, 3)
    s = jnp.einsum("bhqd,bhkd->bhqk", Qh, Kh) / math.sqrt(hd)
    a = jax.nn.softmax(s, axis=-1)
    o = jnp.einsum("bhqk,bhkd->bhqd", a, Vh).transpose(0, 2, 1, 3).reshape(N, L, E)
    o = o @ params["wo"] + params["bo"]
    y = x + o
    y = (y - y.mean(-1, keepdims=True)) * jax.lax.rsqrt(y.var(-1, keepdims=True) + 1e-5)
    y = y * params["g1"] + params["be1"]
    f = jnp.maximum(y @ params["w1"] + params["b1"], 0.0) @ params["w2"] + params["b2"]
    z = y + f
    z = (z - z.mean(-1, keepdims=True)) * jax.lax.rsqrt(z.var(-1, keepdims=True) + 1e-5)
    z = z * params["g2"] + params["be2"]
    return jnp.transpose(z, (1, 0, 2))


if __name__ == "__main__":
    d_model, nhead, dim_ff = 32, 4, 64
    L, N = 16, 2  # (seq, batch); L=16 with q_tile=8 exercises the multi-tile path

    key = jax.random.PRNGKey(0)
    k_src, k_pos, k_par = jax.random.split(key, 3)
    src = jax.random.normal(k_src, (L, N, d_model), jnp.float32)
    pos = jax.random.normal(k_pos, (L, N, d_model), jnp.float32)
    params = init_params(k_par, d_model, nhead, dim_ff)

    out = transformer_encoder_layer(src, pos, params, nhead=nhead, q_tile=8)
    out = jax.block_until_ready(out)

    ref = _reference(src, pos, params, nhead)
    assert out.shape == (L, N, d_model)
    err = jnp.abs(out - ref)
    # kernel uses bf16 matmul operands (fp32 accumulation) -> compare vs fp32 ref loosely
    assert jnp.allclose(out, ref, atol=7.5e-2, rtol=7.5e-2), float(jnp.max(err))
    assert float(jnp.mean(err)) < 2e-2, float(jnp.mean(err))

    print("KERNEL_OK")
</pallas_src>

<mosaic_0001>
module attributes {stable_mosaic.version = 11 : i64} {
  func.func @_encoder_layer_kernel(%arg0: i32, %arg1: i32, %arg2: memref<1x16x32xf32, #tpu.memory_space<vmem>>, %arg3: memref<1x16x32xf32, #tpu.memory_space<vmem>>, %arg4: memref<32x32xbf16, #tpu.memory_space<vmem>>, %arg5: memref<1x32xf32, #tpu.memory_space<vmem>>, %arg6: memref<32x32xbf16, #tpu.memory_space<vmem>>, %arg7: memref<1x32xf32, #tpu.memory_space<vmem>>, %arg8: memref<32x32xbf16, #tpu.memory_space<vmem>>, %arg9: memref<1x32xf32, #tpu.memory_space<vmem>>, %arg10: memref<32x32xbf16, #tpu.memory_space<vmem>>, %arg11: memref<1x32xf32, #tpu.memory_space<vmem>>, %arg12: memref<32x64xbf16, #tpu.memory_space<vmem>>, %arg13: memref<1x64xf32, #tpu.memory_space<vmem>>, %arg14: memref<64x32xbf16, #tpu.memory_space<vmem>>, %arg15: memref<1x32xf32, #tpu.memory_space<vmem>>, %arg16: memref<1x32xf32, #tpu.memory_space<vmem>>, %arg17: memref<1x32xf32, #tpu.memory_space<vmem>>, %arg18: memref<1x32xf32, #tpu.memory_space<vmem>>, %arg19: memref<1x32xf32, #tpu.memory_space<vmem>>, %arg20: memref<1x8x32xf32, #tpu.memory_space<vmem>>, %arg21: memref<16x32xbf16, #tpu.memory_space<vmem>>, %arg22: memref<16x32xbf16, #tpu.memory_space<vmem>>) attributes {dimension_semantics = [#tpu.dimension_semantics<parallel>, #tpu.dimension_semantics<arbitrary>], iteration_bounds = array<i64: 2, 2>, scalar_prefetch = 0 : i64, scratch_operands = 2 : i64, tpu.core_type = #tpu.core_type<tc>, window_params = [{transform_indices = @transform_0, window_bounds = array<i64: 1, 16, 32>}, {transform_indices = @transform_1, window_bounds = array<i64: 1, 16, 32>}, {pipeline_mode = #tpu.pipeline_mode<synchronous>, transform_indices = @transform_2, window_bounds = array<i64: 32, 32>}, {pipeline_mode = #tpu.pipeline_mode<synchronous>, transform_indices = @transform_3, window_bounds = array<i64: 1, 32>}, {pipeline_mode = #tpu.pipeline_mode<synchronous>, transform_indices = @transform_4, window_bounds = array<i64: 32, 32>}, {pipeline_mode = #tpu.pipeline_mode<synchronous>, transform_indices = @transform_5, window_bounds = array<i64: 1, 32>}, {pipeline_mode = #tpu.pipeline_mode<synchronous>, transform_indices = @transform_6, window_bounds = array<i64: 32, 32>}, {pipeline_mode = #tpu.pipeline_mode<synchronous>, transform_indices = @transform_7, window_bounds = array<i64: 1, 32>}, {pipeline_mode = #tpu.pipeline_mode<synchronous>, transform_indices = @transform_8, window_bounds = array<i64: 32, 32>}, {pipeline_mode = #tpu.pipeline_mode<synchronous>, transform_indices = @transform_9, window_bounds = array<i64: 1, 32>}, {pipeline_mode = #tpu.pipeline_mode<synchronous>, transform_indices = @transform_10, window_bounds = array<i64: 32, 64>}, {pipeline_mode = #tpu.pipeline_mode<synchronous>, transform_indices = @transform_11, window_bounds = array<i64: 1, 64>}, {pipeline_mode = #tpu.pipeline_mode<synchronous>, transform_indices = @transform_12, window_bounds = array<i64: 64, 32>}, {pipeline_mode = #tpu.pipeline_mode<synchronous>, transform_indices = @transform_13, window_bounds = array<i64: 1, 32>}, {pipeline_mode = #tpu.pipeline_mode<synchronous>, transform_indices = @transform_14, window_bounds = array<i64: 1, 32>}, {pipeline_mode = #tpu.pipeline_mode<synchronous>, transform_indices = @transform_15, window_bounds = array<i64: 1, 32>}, {pipeline_mode = #tpu.pipeline_mode<synchronous>, transform_indices = @transform_16, window_bounds = array<i64: 1, 32>}, {pipeline_mode = #tpu.pipeline_mode<synchronous>, transform_indices = @transform_17, window_bounds = array<i64: 1, 32>}, {transform_indices = @transform_18, window_bounds = array<i64: 1, 8, 32>}]} {
    %c0_i32 = arith.constant 0 : i32
    %0 = arith.cmpi eq, %arg1, %c0_i32 : i32
    %1 = arith.extui %0 : i1 to i32
    %c0_i32_0 = arith.constant 0 : i32
    %2 = arith.cmpi ne, %1, %c0_i32_0 : i32
    scf.if %2 {
      %c0_72 = arith.constant 0 : index
      %c0_73 = arith.constant 0 : index
      %c0_74 = arith.constant 0 : index
      %172 = vector.load %arg2[%c0_72, %c0_73, %c0_74] : memref<1x16x32xf32, #tpu.memory_space<vmem>>, vector<1x16x32xf32>
      %173 = vector.shape_cast %172 : vector<1x16x32xf32> to vector<16x32xf32>
      %c0_75 = arith.constant 0 : index
      %c0_76 = arith.constant 0 : index
      %c0_77 = arith.constant 0 : index
      %174 = vector.load %arg3[%c0_75, %c0_76, %c0_77] : memref<1x16x32xf32, #tpu.memory_space<vmem>>, vector<1x16x32xf32>
      %175 = vector.shape_cast %174 : vector<1x16x32xf32> to vector<16x32xf32>
      %176 = arith.addf %173, %175 : vector<16x32xf32>
      %177 = arith.truncf %176 : vector<16x32xf32> to vector<16x32xbf16>
      %c0_78 = arith.constant 0 : index
      %c0_79 = arith.constant 0 : index
      %178 = vector.load %arg6[%c0_78, %c0_79] : memref<32x32xbf16, #tpu.memory_space<vmem>>, vector<32x32xbf16>
      %cst_80 = arith.constant dense<0.000000e+00> : vector<16x32xf32>
      %179 = tpu.matmul %177, %178, %cst_80 {dimension_numbers = #tpu.dot_dimension_numbers<[1], [0], [0], [1], [0, 0, 1, 1], [], []>} : vector<16x32xbf16>, vector<32x32xbf16>, vector<16x32xf32> -> vector<16x32xf32>
      %c0_81 = arith.constant 0 : index
      %c0_82 = arith.constant 0 : index
      %180 = vector.load %arg7[%c0_81, %c0_82] : memref<1x32xf32, #tpu.memory_space<vmem>>, vector<1x32xf32>
      %181 = vector.broadcast %180 : vector<1x32xf32> to vector<16x32xf32>
      %182 = arith.addf %179, %181 : vector<16x32xf32>
      %183 = arith.truncf %173 : vector<16x32xf32> to vector<16x32xbf16>
      %c0_83 = arith.constant 0 : index
      %c0_84 = arith.constant 0 : index
      %184 = vector.load %arg8[%c0_83, %c0_84] : memref<32x32xbf16, #tpu.memory_space<vmem>>, vector<32x32xbf16>
      %cst_85 = arith.constant dense<0.000000e+00> : vector<16x32xf32>
      %185 = tpu.matmul %183, %184, %cst_85 {dimension_numbers = #tpu.dot_dimension_numbers<[1], [0], [0], [1], [0, 0, 1, 1], [], []>} : vector<16x32xbf16>, vector<32x32xbf16>, vector<16x32xf32> -> vector<16x32xf32>
      %c0_86 = arith.constant 0 : index
      %c0_87 = arith.constant 0 : index
      %186 = vector.load %arg9[%c0_86, %c0_87] : memref<1x32xf32, #tpu.memory_space<vmem>>, vector<1x32xf32>
      %187 = vector.broadcast %186 : vector<1x32xf32> to vector<16x32xf32>
      %188 = arith.addf %185, %187 : vector<16x32xf32>
      %189 = arith.truncf %182 : vector<16x32xf32> to vector<16x32xbf16>
      %c0_88 = arith.constant 0 : index
      %c0_89 = arith.constant 0 : index
      %190 = vector.load %arg21[%c0_88, %c0_89] : memref<16x32xbf16, #tpu.memory_space<vmem>>, vector<16x32xbf16>
      tpu.vector_store %arg21[%c0_88, %c0_89], %189 {strides = array<i32>} : memref<16x32xbf16, #tpu.memory_space<vmem>>, vector<16x32xbf16>,
      %191 = arith.truncf %188 : vector<16x32xf32> to vector<16x32xbf16>
      %c0_90 = arith.constant 0 : index
      %c0_91 = arith.constant 0 : index
      %192 = vector.load %arg22[%c0_90, %c0_91] : memref<16x32xbf16, #tpu.memory_space<vmem>>, vector<16x32xbf16>
      tpu.vector_store %arg22[%c0_90, %c0_91], %191 {strides = array<i32>} : memref<16x32xbf16, #tpu.memory_space<vmem>>, vector<16x32xbf16>,
    } else {
    }
    %c8_i32 = arith.constant 8 : i32
    %3 = arith.muli %arg1, %c8_i32 : i32
    %4 = tpu.assume_multiple %3, 8 : i32
    %c0 = arith.constant 0 : index
    %5 = arith.index_cast %4 : i32 to index
    %c0_1 = arith.constant 0 : index
    %6 = vector.load %arg2[%c0, %5, %c0_1] : memref<1x16x32xf32, #tpu.memory_space<vmem>>, vector<1x8x32xf32>
    %7 = vector.shape_cast %6 : vector<1x8x32xf32> to vector<8x32xf32>
    %c0_2 = arith.constant 0 : index
    %8 = arith.index_cast %4 : i32 to index
    %c0_3 = arith.constant 0 : index
    %9 = vector.load %arg3[%c0_2, %8, %c0_3] : memref<1x16x32xf32, #tpu.memory_space<vmem>>, vector<1x8x32xf32>
    %10 = vector.shape_cast %9 : vector<1x8x32xf32> to vector<8x32xf32>
    %11 = arith.addf %7, %10 : vector<8x32xf32>
    %12 = arith.truncf %11 : vector<8x32xf32> to vector<8x32xbf16>
    %c0_4 = arith.constant 0 : index
    %c0_5 = arith.constant 0 : index
    %13 = vector.load %arg4[%c0_4, %c0_5] : memref<32x32xbf16, #tpu.memory_space<vmem>>, vector<32x32xbf16>
    %cst = arith.constant dense<0.000000e+00> : vector<8x32xf32>
    %14 = tpu.matmul %12, %13, %cst {dimension_numbers = #tpu.dot_dimension_numbers<[1], [0], [0], [1], [0, 0, 1, 1], [], []>} : vector<8x32xbf16>, vector<32x32xbf16>, vector<8x32xf32> -> vector<8x32xf32>
    %c0_6 = arith.constant 0 : index
    %c0_7 = arith.constant 0 : index
    %15 = vector.load %arg5[%c0_6, %c0_7] : memref<1x32xf32, #tpu.memory_space<vmem>>, vector<1x32xf32>
    %16 = vector.broadcast %15 : vector<1x32xf32> to vector<8x32xf32>
    %17 = arith.addf %14, %16 : vector<8x32xf32>
    %18 = arith.truncf %17 : vector<8x32xf32> to vector<8x32xbf16>
    %c0_8 = arith.constant 0 : index
    %c0_9 = arith.constant 0 : index
    %19 = vector.load %arg21[%c0_8, %c0_9] : memref<16x32xbf16, #tpu.memory_space<vmem>>, vector<16x32xbf16>
    %c0_10 = arith.constant 0 : index
    %c0_11 = arith.constant 0 : index
    %20 = vector.load %arg22[%c0_10, %c0_11] : memref<16x32xbf16, #tpu.memory_space<vmem>>, vector<16x32xbf16>
    %cst_12 = arith.constant 0.000000e+00 : f32
    %21 = vector.broadcast %cst_12 : f32 to vector<8x32xf32>
    %c0_13 = arith.constant 0 : index
    %c0_14 = arith.constant 0 : index
    %22 = vector.load %arg11[%c0_13, %c0_14] : memref<1x32xf32, #tpu.memory_space<vmem>>, vector<1x32xf32>
    %23 = vector.broadcast %22 : vector<1x32xf32> to vector<8x32xf32>
    %24 = arith.addf %21, %23 : vector<8x32xf32>
    %25 = vector.extract_strided_slice %18 {offsets = [0, 0], sizes = [8, 8], strides = [1, 1]} : vector<8x32xbf16> to vector<8x8xbf16>
    %26 = vector.extract_strided_slice %19 {offsets = [0, 0], sizes = [16, 8], strides = [1, 1]} : vector<16x32xbf16> to vector<16x8xbf16>
    "tpu.trace_start"() <{level = 10 : i32, message = "qd,kd->qk"}> : () -> ()
    %cst_15 = arith.constant dense<0.000000e+00> : vector<8x16xf32>
    %27 = tpu.matmul %25, %26, %cst_15 {dimension_numbers = #tpu.dot_dimension_numbers<[1], [1], [0], [0], [0, 0, 1, 0], [], []>} : vector<8x8xbf16>, vector<16x8xbf16>, vector<8x16xf32> -> vector<8x16xf32>
    "tpu.trace_stop"() : () -> ()
    %cst_16 = arith.constant dense<0xFF800000> : vector<8xf32>
    %28 = vector.multi_reduction <maximumf>, %27, %cst_16 [1] : vector<8x16xf32> to vector<8xf32>
    %29 = vector.shape_cast %28 : vector<8xf32> to vector<8x1xf32>
    %30 = vector.broadcast %29 : vector<8x1xf32> to vector<8x16xf32>
    %31 = arith.subf %27, %30 : vector<8x16xf32>
    %32 = math.exp %31 : vector<8x16xf32>
    %cst_17 = arith.constant dense<0.000000e+00> : vector<8xf32>
    %33 = vector.multi_reduction <add>, %32, %cst_17 [1] : vector<8x16xf32> to vector<8xf32>
    %34 = vector.shape_cast %33 : vector<8xf32> to vector<8x1xf32>
    %35 = tpu.reciprocal %34 {approx = true} : vector<8x1xf32> -> vector<8x1xf32>
    %36 = vector.broadcast %35 : vector<8x1xf32> to vector<8x16xf32>
    %37 = arith.mulf %32, %36 : vector<8x16xf32>
    %38 = arith.truncf %37 : vector<8x16xf32> to vector<8x16xbf16>
    %39 = vector.extract_strided_slice %20 {offsets = [0, 0], sizes = [16, 8], strides = [1, 1]} : vector<16x32xbf16> to vector<16x8xbf16>
    %cst_18 = arith.constant dense<0.000000e+00> : vector<8x8xf32>
    %40 = tpu.matmul %38, %39, %cst_18 {dimension_numbers = #tpu.dot_dimension_numbers<[1], [0], [0], [1], [0, 0, 1, 1], [], []>} : vector<8x16xbf16>, vector<16x8xbf16>, vector<8x8xf32> -> vector<8x8xf32>
    %41 = arith.truncf %40 : vector<8x8xf32> to vector<8x8xbf16>
    %c0_19 = arith.constant 0 : index
    %c0_20 = arith.constant 0 : index
    %42 = vector.load %arg10[%c0_19, %c0_20] : memref<32x32xbf16, #tpu.memory_space<vmem>>, vector<8x32xbf16>
    %cst_21 = arith.constant dense<0.000000e+00> : vector<8x32xf32>
    %43 = tpu.matmul %41, %42, %cst_21 {dimension_numbers = #tpu.dot_dimension_numbers<[1], [0], [0], [1], [0, 0, 1, 1], [], []>} : vector<8x8xbf16>, vector<8x32xbf16>, vector<8x32xf32> -> vector<8x32xf32>
    %44 = arith.addf %24, %43 : vector<8x32xf32>
    %45 = vector.extract_strided_slice %18 {offsets = [0, 8], sizes = [8, 8], strides = [1, 1]} : vector<8x32xbf16> to vector<8x8xbf16>
    %46 = vector.extract_strided_slice %19 {offsets = [0, 8], sizes = [16, 8], strides = [1, 1]} : vector<16x32xbf16> to vector<16x8xbf16>
    "tpu.trace_start"() <{level = 10 : i32, message = "qd,kd->qk"}> : () -> ()
    %cst_22 = arith.constant dense<0.000000e+00> : vector<8x16xf32>
    %47 = tpu.matmul %45, %46, %cst_22 {dimension_numbers = #tpu.dot_dimension_numbers<[1], [1], [0], [0], [0, 0, 1, 0], [], []>} : vector<8x8xbf16>, vector<16x8xbf16>, vector<8x16xf32> -> vector<8x16xf32>
    "tpu.trace_stop"() : () -> ()
    %cst_23 = arith.constant dense<0xFF800000> : vector<8xf32>
    %48 = vector.multi_reduction <maximumf>, %47, %cst_23 [1] : vector<8x16xf32> to vector<8xf32>
    %49 = vector.shape_cast %48 : vector<8xf32> to vector<8x1xf32>
    %50 = vector.broadcast %49 : vector<8x1xf32> to vector<8x16xf32>
    %51 = arith.subf %47, %50 : vector<8x16xf32>
    %52 = math.exp %51 : vector<8x16xf32>
    %cst_24 = arith.constant dense<0.000000e+00> : vector<8xf32>
    %53 = vector.multi_reduction <add>, %52, %cst_24 [1] : vector<8x16xf32> to vector<8xf32>
    %54 = vector.shape_cast %53 : vector<8xf32> to vector<8x1xf32>
    %55 = tpu.reciprocal %54 {approx = true} : vector<8x1xf32> -> vector<8x1xf32>
    %56 = vector.broadcast %55 : vector<8x1xf32> to vector<8x16xf32>
    %57 = arith.mulf %52, %56 : vector<8x16xf32>
    %58 = arith.truncf %57 : vector<8x16xf32> to vector<8x16xbf16>
    %59 = vector.extract_strided_slice %20 {offsets = [0, 8], sizes = [16, 8], strides = [1, 1]} : vector<16x32xbf16> to vector<16x8xbf16>
    %cst_25 = arith.constant dense<0.000000e+00> : vector<8x8xf32>
    %60 = tpu.matmul %58, %59, %cst_25 {dimension_numbers = #tpu.dot_dimension_numbers<[1], [0], [0], [1], [0, 0, 1, 1], [], []>} : vector<8x16xbf16>, vector<16x8xbf16>, vector<8x8xf32> -> vector<8x8xf32>
    %61 = arith.truncf %60 : vector<8x8xf32> to vector<8x8xbf16>
    %c8 = arith.constant 8 : index
    %c0_26 = arith.constant 0 : index
    %62 = vector.load %arg10[%c8, %c0_26] : memref<32x32xbf16, #tpu.memory_space<vmem>>, vector<8x32xbf16>
    %cst_27 = arith.constant dense<0.000000e+00> : vector<8x32xf32>
    %63 = tpu.matmul %61, %62, %cst_27 {dimension_numbers = #tpu.dot_dimension_numbers<[1], [0], [0], [1], [0, 0, 1, 1], [], []>} : vector<8x8xbf16>, vector<8x32xbf16>, vector<8x32xf32> -> vector<8x32xf32>
    %64 = arith.addf %44, %63 : vector<8x32xf32>
    %65 = vector.extract_strided_slice %18 {offsets = [0, 16], sizes = [8, 8], strides = [1, 1]} : vector<8x32xbf16> to vector<8x8xbf16>
    %66 = vector.extract_strided_slice %19 {offsets = [0, 16], sizes = [16, 8], strides = [1, 1]} : vector<16x32xbf16> to vector<16x8xbf16>
    "tpu.trace_start"() <{level = 10 : i32, message = "qd,kd->qk"}> : () -> ()
    %cst_28 = arith.constant dense<0.000000e+00> : vector<8x16xf32>
    %67 = tpu.matmul %65, %66, %cst_28 {dimension_numbers = #tpu.dot_dimension_numbers<[1], [1], [0], [0], [0, 0, 1, 0], [], []>} : vector<8x8xbf16>, vector<16x8xbf16>, vector<8x16xf32> -> vector<8x16xf32>
    "tpu.trace_stop"() : () -> ()
    %cst_29 = arith.constant dense<0xFF800000> : vector<8xf32>
    %68 = vector.multi_reduction <maximumf>, %67, %cst_29 [1] : vector<8x16xf32> to vector<8xf32>
    %69 = vector.shape_cast %68 : vector<8xf32> to vector<8x1xf32>
    %70 = vector.broadcast %69 : vector<8x1xf32> to vector<8x16xf32>
    %71 = arith.subf %67, %70 : vector<8x16xf32>
    %72 = math.exp %71 : vector<8x16xf32>
    %cst_30 = arith.constant dense<0.000000e+00> : vector<8xf32>
    %73 = vector.multi_reduction <add>, %72, %cst_30 [1] : vector<8x16xf32> to vector<8xf32>
    %74 = vector.shape_cast %73 : vector<8xf32> to vector<8x1xf32>
    %75 = tpu.reciprocal %74 {approx = true} : vector<8x1xf32> -> vector<8x1xf32>
    %76 = vector.broadcast %75 : vector<8x1xf32> to vector<8x16xf32>
    %77 = arith.mulf %72, %76 : vector<8x16xf32>
    %78 = arith.truncf %77 : vector<8x16xf32> to vector<8x16xbf16>
    %79 = vector.extract_strided_slice %20 {offsets = [0, 16], sizes = [16, 8], strides = [1, 1]} : vector<16x32xbf16> to vector<16x8xbf16>
    %cst_31 = arith.constant dense<0.000000e+00> : vector<8x8xf32>
    %80 = tpu.matmul %78, %79, %cst_31 {dimension_numbers = #tpu.dot_dimension_numbers<[1], [0], [0], [1], [0, 0, 1, 1], [], []>} : vector<8x16xbf16>, vector<16x8xbf16>, vector<8x8xf32> -> vector<8x8xf32>
    %81 = arith.truncf %80 : vector<8x8xf32> to vector<8x8xbf16>
    %c16 = arith.constant 16 : index
    %c0_32 = arith.constant 0 : index
    %82 = vector.load %arg10[%c16, %c0_32] : memref<32x32xbf16, #tpu.memory_space<vmem>>, vector<8x32xbf16>
    %cst_33 = arith.constant dense<0.000000e+00> : vector<8x32xf32>
    %83 = tpu.matmul %81, %82, %cst_33 {dimension_numbers = #tpu.dot_dimension_numbers<[1], [0], [0], [1], [0, 0, 1, 1], [], []>} : vector<8x8xbf16>, vector<8x32xbf16>, vector<8x32xf32> -> vector<8x32xf32>
    %84 = arith.addf %64, %83 : vector<8x32xf32>
    %85 = vector.extract_strided_slice %18 {offsets = [0, 24], sizes = [8, 8], strides = [1, 1]} : vector<8x32xbf16> to vector<8x8xbf16>
    %86 = vector.extract_strided_slice %19 {offsets = [0, 24], sizes = [16, 8], strides = [1, 1]} : vector<16x32xbf16> to vector<16x8xbf16>
    "tpu.trace_start"() <{level = 10 : i32, message = "qd,kd->qk"}> : () -> ()
    %cst_34 = arith.constant dense<0.000000e+00> : vector<8x16xf32>
    %87 = tpu.matmul %85, %86, %cst_34 {dimension_numbers = #tpu.dot_dimension_numbers<[1], [1], [0], [0], [0, 0, 1, 0], [], []>} : vector<8x8xbf16>, vector<16x8xbf16>, vector<8x16xf32> -> vector<8x16xf32>
    "tpu.trace_stop"() : () -> ()
    %cst_35 = arith.constant dense<0xFF800000> : vector<8xf32>
    %88 = vector.multi_reduction <maximumf>, %87, %cst_35 [1] : vector<8x16xf32> to vector<8xf32>
    %89 = vector.shape_cast %88 : vector<8xf32> to vector<8x1xf32>
    %90 = vector.broadcast %89 : vector<8x1xf32> to vector<8x16xf32>
    %91 = arith.subf %87, %90 : vector<8x16xf32>
    %92 = math.exp %91 : vector<8x16xf32>
    %cst_36 = arith.constant dense<0.000000e+00> : vector<8xf32>
    %93 = vector.multi_reduction <add>, %92, %cst_36 [1] : vector<8x16xf32> to vector<8xf32>
    %94 = vector.shape_cast %93 : vector<8xf32> to vector<8x1xf32>
    %95 = tpu.reciprocal %94 {approx = true} : vector<8x1xf32> -> vector<8x1xf32>
    %96 = vector.broadcast %95 : vector<8x1xf32> to vector<8x16xf32>
    %97 = arith.mulf %92, %96 : vector<8x16xf32>
    %98 = arith.truncf %97 : vector<8x16xf32> to vector<8x16xbf16>
    %99 = vector.extract_strided_slice %20 {offsets = [0, 24], sizes = [16, 8], strides = [1, 1]} : vector<16x32xbf16> to vector<16x8xbf16>
    %cst_37 = arith.constant dense<0.000000e+00> : vector<8x8xf32>
    %100 = tpu.matmul %98, %99, %cst_37 {dimension_numbers = #tpu.dot_dimension_numbers<[1], [0], [0], [1], [0, 0, 1, 1], [], []>} : vector<8x16xbf16>, vector<16x8xbf16>, vector<8x8xf32> -> vector<8x8xf32>
    %101 = arith.truncf %100 : vector<8x8xf32> to vector<8x8xbf16>
    %c24 = arith.constant 24 : index
    %c0_38 = arith.constant 0 : index
    %102 = vector.load %arg10[%c24, %c0_38] : memref<32x32xbf16, #tpu.memory_space<vmem>>, vector<8x32xbf16>
    %cst_39 = arith.constant dense<0.000000e+00> : vector<8x32xf32>
    %103 = tpu.matmul %101, %102, %cst_39 {dimension_numbers = #tpu.dot_dimension_numbers<[1], [0], [0], [1], [0, 0, 1, 1], [], []>} : vector<8x8xbf16>, vector<8x32xbf16>, vector<8x32xf32> -> vector<8x32xf32>
    %104 = arith.addf %84, %103 : vector<8x32xf32>
    %105 = arith.addf %7, %104 : vector<8x32xf32>
    %cst_40 = arith.constant dense<0.000000e+00> : vector<8xf32>
    %106 = vector.multi_reduction <add>, %105, %cst_40 [1] : vector<8x32xf32> to vector<8xf32>
    %107 = vector.shape_cast %106 : vector<8xf32> to vector<8x1xf32>
    %cst_41 = arith.constant 3.200000e+01 : f32
    %108 = vector.broadcast %cst_41 : f32 to vector<8x1xf32>
    %109 = arith.divf %107, %108 : vector<8x1xf32>
    %110 = vector.broadcast %109 : vector<8x1xf32> to vector<8x32xf32>
    %111 = arith.subf %105, %110 : vector<8x32xf32>
    %112 = arith.mulf %111, %111 : vector<8x32xf32>
    %cst_42 = arith.constant dense<0.000000e+00> : vector<8xf32>
    %113 = vector.multi_reduction <add>, %112, %cst_42 [1] : vector<8x32xf32> to vector<8xf32>
    %114 = vector.shape_cast %113 : vector<8xf32> to vector<8x1xf32>
    %cst_43 = arith.constant 3.200000e+01 : f32
    %115 = vector.broadcast %cst_43 : f32 to vector<8x1xf32>
    %116 = arith.divf %114, %115 : vector<8x1xf32>
    %117 = vector.broadcast %109 : vector<8x1xf32> to vector<8x32xf32>
    %118 = arith.subf %105, %117 : vector<8x32xf32>
    %cst_44 = arith.constant 9.99999974E-6 : f32
    %119 = vector.broadcast %cst_44 : f32 to vector<8x1xf32>
    %120 = arith.addf %116, %119 : vector<8x1xf32>
    %121 = math.rsqrt %120 : vector<8x1xf32>
    %122 = vector.broadcast %121 : vector<8x1xf32> to vector<8x32xf32>
    %123 = arith.mulf %118, %122 : vector<8x32xf32>
    %c0_45 = arith.constant 0 : index
    %c0_46 = arith.constant 0 : index
    %124 = vector.load %arg16[%c0_45, %c0_46] : memref<1x32xf32, #tpu.memory_space<vmem>>, vector<1x32xf32>
    %125 = vector.broadcast %124 : vector<1x32xf32> to vector<8x32xf32>
    %126 = arith.mulf %123, %125 : vector<8x32xf32>
    %c0_47 = arith.constant 0 : index
    %c0_48 = arith.constant 0 : index
    %127 = vector.load %arg17[%c0_47, %c0_48] : memref<1x32xf32, #tpu.memory_space<vmem>>, vector<1x32xf32>
    %128 = vector.broadcast %127 : vector<1x32xf32> to vector<8x32xf32>
    %129 = arith.addf %126, %128 : vector<8x32xf32>
    %130 = arith.truncf %129 : vector<8x32xf32> to vector<8x32xbf16>
    %c0_49 = arith.constant 0 : index
    %c0_50 = arith.constant 0 : index
    %131 = vector.load %arg12[%c0_49, %c0_50] : memref<32x64xbf16, #tpu.memory_space<vmem>>, vector<32x64xbf16>
    %cst_51 = arith.constant dense<0.000000e+00> : vector<8x64xf32>
    %132 = tpu.matmul %130, %131, %cst_51 {dimension_numbers = #tpu.dot_dimension_numbers<[1], [0], [0], [1], [0, 0, 1, 1], [], []>} : vector<8x32xbf16>, vector<32x64xbf16>, vector<8x64xf32> -> vector<8x64xf32>
    %c0_52 = arith.constant 0 : index
    %c0_53 = arith.constant 0 : index
    %133 = vector.load %arg13[%c0_52, %c0_53] : memref<1x64xf32, #tpu.memory_space<vmem>>, vector<1x64xf32>
    %134 = vector.broadcast %133 : vector<1x64xf32> to vector<8x64xf32>
    %135 = arith.addf %132, %134 : vector<8x64xf32>
    %cst_54 = arith.constant 0.000000e+00 : f32
    %136 = vector.broadcast %cst_54 : f32 to vector<8x64xf32>
    %137 = arith.maximumf %135, %136 : vector<8x64xf32>
    %138 = arith.truncf %137 : vector<8x64xf32> to vector<8x64xbf16>
    %c0_55 = arith.constant 0 : index
    %c0_56 = arith.constant 0 : index
    %139 = vector.load %arg14[%c0_55, %c0_56] : memref<64x32xbf16, #tpu.memory_space<vmem>>, vector<64x32xbf16>
    %cst_57 = arith.constant dense<0.000000e+00> : vector<8x32xf32>
    %140 = tpu.matmul %138, %139, %cst_57 {dimension_numbers = #tpu.dot_dimension_numbers<[1], [0], [0], [1], [0, 0, 1, 1], [], []>} : vector<8x64xbf16>, vector<64x32xbf16>, vector<8x32xf32> -> vector<8x32xf32>
    %c0_58 = arith.constant 0 : index
    %c0_59 = arith.constant 0 : index
    %141 = vector.load %arg15[%c0_58, %c0_59] : memref<1x32xf32, #tpu.memory_space<vmem>>, vector<1x32xf32>
    %142 = vector.broadcast %141 : vector<1x32xf32> to vector<8x32xf32>
    %143 = arith.addf %140, %142 : vector<8x32xf32>
    %144 = arith.addf %129, %143 : vector<8x32xf32>
    %cst_60 = arith.constant dense<0.000000e+00> : vector<8xf32>
    %145 = vector.multi_reduction <add>, %144, %cst_60 [1] : vector<8x32xf32> to vector<8xf32>
    %146 = vector.shape_cast %145 : vector<8xf32> to vector<8x1xf32>
    %cst_61 = arith.constant 3.200000e+01 : f32
    %147 = vector.broadcast %cst_61 : f32 to vector<8x1xf32>
    %148 = arith.divf %146, %147 : vector<8x1xf32>
    %149 = vector.broadcast %148 : vector<8x1xf32> to vector<8x32xf32>
    %150 = arith.subf %144, %149 : vector<8x32xf32>
    %151 = arith.mulf %150, %150 : vector<8x32xf32>
    %cst_62 = arith.constant dense<0.000000e+00> : vector<8xf32>
    %152 = vector.multi_reduction <add>, %151, %cst_62 [1] : vector<8x32xf32> to vector<8xf32>
    %153 = vector.shape_cast %152 : vector<8xf32> to vector<8x1xf32>
    %cst_63 = arith.constant 3.200000e+01 : f32
    %154 = vector.broadcast %cst_63 : f32 to vector<8x1xf32>
    %155 = arith.divf %153, %154 : vector<8x1xf32>
    %156 = vector.broadcast %148 : vector<8x1xf32> to vector<8x32xf32>
    %157 = arith.subf %144, %156 : vector<8x32xf32>
    %cst_64 = arith.constant 9.99999974E-6 : f32
    %158 = vector.broadcast %cst_64 : f32 to vector<8x1xf32>
    %159 = arith.addf %155, %158 : vector<8x1xf32>
    %160 = math.rsqrt %159 : vector<8x1xf32>
    %161 = vector.broadcast %160 : vector<8x1xf32> to vector<8x32xf32>
    %162 = arith.mulf %157, %161 : vector<8x32xf32>
    %c0_65 = arith.constant 0 : index
    %c0_66 = arith.constant 0 : index
    %163 = vector.load %arg18[%c0_65, %c0_66] : memref<1x32xf32, #tpu.memory_space<vmem>>, vector<1x32xf32>
    %164 = vector.broadcast %163 : vector<1x32xf32> to vector<8x32xf32>
    %165 = arith.mulf %162, %164 : vector<8x32xf32>
    %c0_67 = arith.constant 0 : index
    %c0_68 = arith.constant 0 : index
    %166 = vector.load %arg19[%c0_67, %c0_68] : memref<1x32xf32, #tpu.memory_space<vmem>>, vector<1x32xf32>
    %167 = vector.broadcast %166 : vector<1x32xf32> to vector<8x32xf32>
    %168 = arith.addf %165, %167 : vector<8x32xf32>
    %c0_69 = arith.constant 0 : index
    %c0_70 = arith.constant 0 : index
    %c0_71 = arith.constant 0 : index
    %169 = vector.load %arg20[%c0_69, %c0_70, %c0_71] : memref<1x8x32xf32, #tpu.memory_space<vmem>>, vector<1x8x32xf32>
    %170 = vector.shape_cast %169 : vector<1x8x32xf32> to vector<8x32xf32>
    %171 = vector.shape_cast %168 : vector<8x32xf32> to vector<1x8x32xf32>
    tpu.vector_store %arg20[%c0_69, %c0_70, %c0_71], %171 {strides = array<i32>} : memref<1x8x32xf32, #tpu.memory_space<vmem>>, vector<1x8x32xf32>,
    return
  }
  func.func @transform_0(%arg0: i32, %arg1: i32) -> (i32, i32, i32) {
    %c0_i32 = arith.constant 0 : i32
    %c0_i32_0 = arith.constant 0 : i32
    %c0_i32_1 = arith.constant 0 : i32
    return %arg0, %c0_i32, %c0_i32_0 : i32, i32, i32
  }
  func.func @transform_1(%arg0: i32, %arg1: i32) -> (i32, i32, i32) {
    %c0_i32 = arith.constant 0 : i32
    %c0_i32_0 = arith.constant 0 : i32
    %c0_i32_1 = arith.constant 0 : i32
    return %arg0, %c0_i32, %c0_i32_0 : i32, i32, i32
  }
  func.func @transform_2(%arg0: i32, %arg1: i32) -> (i32, i32) {
    %c0_i32 = arith.constant 0 : i32
    %c0_i32_0 = arith.constant 0 : i32
    %c0_i32_1 = arith.constant 0 : i32
    return %c0_i32, %c0_i32_0 : i32, i32
  }
  func.func @transform_3(%arg0: i32, %arg1: i32) -> (i32, i32) {
    %c0_i32 = arith.constant 0 : i32
    %c0_i32_0 = arith.constant 0 : i32
    %c0_i32_1 = arith.constant 0 : i32
    return %c0_i32, %c0_i32_0 : i32, i32
  }
  func.func @transform_4(%arg0: i32, %arg1: i32) -> (i32, i32) {
    %c0_i32 = arith.constant 0 : i32
    %c0_i32_0 = arith.constant 0 : i32
    %c0_i32_1 = arith.constant 0 : i32
    return %c0_i32, %c0_i32_0 : i32, i32
  }
  func.func @transform_5(%arg0: i32, %arg1: i32) -> (i32, i32) {
    %c0_i32 = arith.constant 0 : i32
    %c0_i32_0 = arith.constant 0 : i32
    %c0_i32_1 = arith.constant 0 : i32
    return %c0_i32, %c0_i32_0 : i32, i32
  }
  func.func @transform_6(%arg0: i32, %arg1: i32) -> (i32, i32) {
    %c0_i32 = arith.constant 0 : i32
    %c0_i32_0 = arith.constant 0 : i32
    %c0_i32_1 = arith.constant 0 : i32
    return %c0_i32, %c0_i32_0 : i32, i32
  }
  func.func @transform_7(%arg0: i32, %arg1: i32) -> (i32, i32) {
    %c0_i32 = arith.constant 0 : i32
    %c0_i32_0 = arith.constant 0 : i32
    %c0_i32_1 = arith.constant 0 : i32
    return %c0_i32, %c0_i32_0 : i32, i32
  }
  func.func @transform_8(%arg0: i32, %arg1: i32) -> (i32, i32) {
    %c0_i32 = arith.constant 0 : i32
    %c0_i32_0 = arith.constant 0 : i32
    %c0_i32_1 = arith.constant 0 : i32
    return %c0_i32, %c0_i32_0 : i32, i32
  }
  func.func @transform_9(%arg0: i32, %arg1: i32) -> (i32, i32) {
    %c0_i32 = arith.constant 0 : i32
    %c0_i32_0 = arith.constant 0 : i32
    %c0_i32_1 = arith.constant 0 : i32
    return %c0_i32, %c0_i32_0 : i32, i32
  }
  func.func @transform_10(%arg0: i32, %arg1: i32) -> (i32, i32) {
    %c0_i32 = arith.constant 0 : i32
    %c0_i32_0 = arith.constant 0 : i32
    %c0_i32_1 = arith.constant 0 : i32
    return %c0_i32, %c0_i32_0 : i32, i32
  }
  func.func @transform_11(%arg0: i32, %arg1: i32) -> (i32, i32) {
    %c0_i32 = arith.constant 0 : i32
    %c0_i32_0 = arith.constant 0 : i32
    %c0_i32_1 = arith.constant 0 : i32
    return %c0_i32, %c0_i32_0 : i32, i32
  }
  func.func @transform_12(%arg0: i32, %arg1: i32) -> (i32, i32) {
    %c0_i32 = arith.constant 0 : i32
    %c0_i32_0 = arith.constant 0 : i32
    %c0_i32_1 = arith.constant 0 : i32
    return %c0_i32, %c0_i32_0 : i32, i32
  }
  func.func @transform_13(%arg0: i32, %arg1: i32) -> (i32, i32) {
    %c0_i32 = arith.constant 0 : i32
    %c0_i32_0 = arith.constant 0 : i32
    %c0_i32_1 = arith.constant 0 : i32
    return %c0_i32, %c0_i32_0 : i32, i32
  }
  func.func @transform_14(%arg0: i32, %arg1: i32) -> (i32, i32) {
    %c0_i32 = arith.constant 0 : i32
    %c0_i32_0 = arith.constant 0 : i32
    %c0_i32_1 = arith.constant 0 : i32
    return %c0_i32, %c0_i32_0 : i32, i32
  }
  func.func @transform_15(%arg0: i32, %arg1: i32) -> (i32, i32) {
    %c0_i32 = arith.constant 0 : i32
    %c0_i32_0 = arith.constant 0 : i32
    %c0_i32_1 = arith.constant 0 : i32
    return %c0_i32, %c0_i32_0 : i32, i32
  }
  func.func @transform_16(%arg0: i32, %arg1: i32) -> (i32, i32) {
    %c0_i32 = arith.constant 0 : i32
    %c0_i32_0 = arith.constant 0 : i32
    %c0_i32_1 = arith.constant 0 : i32
    return %c0_i32, %c0_i32_0 : i32, i32
  }
  func.func @transform_17(%arg0: i32, %arg1: i32) -> (i32, i32) {
    %c0_i32 = arith.constant 0 : i32
    %c0_i32_0 = arith.constant 0 : i32
    %c0_i32_1 = arith.constant 0 : i32
    return %c0_i32, %c0_i32_0 : i32, i32
  }
  func.func @transform_18(%arg0: i32, %arg1: i32) -> (i32, i32, i32) {
    %c0_i32 = arith.constant 0 : i32
    %c0_i32_0 = arith.constant 0 : i32
    return %arg0, %arg1, %c0_i32 : i32, i32, i32
  }
}

</mosaic_0001>

<llo_original>
// kernel: tpu_custom_call.1
$region0: #{tpu_custom_call.1}
  #allocation0 [shape = 'u32[]', space=smem, size = 0x4, offset = 0x4, fixed_abs, tag = 'smem constant byte address 0x4 - core index']
  #allocation1 [shape = 'u32[144,128]{1,0:T(1,128)}', space=vmem, size = 0x12000, scoped, tag = 'internal scratch']
  #allocation2 [shape = 'bf16[16,32]{1,0:T(16,128)(2,1)}', space=vmem, size = 0x1000, scoped, tag = 'scratch operand']
  #allocation3 [shape = 'bf16[16,32]{1,0:T(16,128)(2,1)}', space=vmem, size = 0x1000, scoped, tag = 'scratch operand']
  %s0 = inlined_call_operand.hbm [shape: f32[2,16,32], index: 0, kind: input, shape index: {}]
  %s1 = inlined_call_operand.hbm [shape: f32[2,16,32], index: 1, kind: input, shape index: {}]
  %s2 = inlined_call_operand.hbm [shape: bf16[32,32], index: 2, kind: input, shape index: {}]
  %s3 = inlined_call_operand.hbm [shape: f32[1,32], index: 3, kind: input, shape index: {}]
  %s4 = inlined_call_operand.hbm [shape: bf16[32,32], index: 4, kind: input, shape index: {}]
  %s5 = inlined_call_operand.hbm [shape: f32[1,32], index: 5, kind: input, shape index: {}]
  %s6 = inlined_call_operand.hbm [shape: bf16[32,32], index: 6, kind: input, shape index: {}]
  %s7 = inlined_call_operand.hbm [shape: f32[1,32], index: 7, kind: input, shape index: {}]
  %s8 = inlined_call_operand.hbm [shape: bf16[32,32], index: 8, kind: input, shape index: {}]
  %s9 = inlined_call_operand.hbm [shape: f32[1,32], index: 9, kind: input, shape index: {}]
  %s10 = inlined_call_operand.hbm [shape: bf16[32,64], index: 10, kind: input, shape index: {}]
  %s11 = inlined_call_operand.hbm [shape: f32[1,64], index: 11, kind: input, shape index: {}]
  %s12 = inlined_call_operand.hbm [shape: bf16[64,32], index: 12, kind: input, shape index: {}]
  %s13 = inlined_call_operand.hbm [shape: f32[1,32], index: 13, kind: input, shape index: {}]
  %s14 = inlined_call_operand.hbm [shape: f32[1,32], index: 14, kind: input, shape index: {}]
  %s15 = inlined_call_operand.hbm [shape: f32[1,32], index: 15, kind: input, shape index: {}]
  %s16 = inlined_call_operand.hbm [shape: f32[1,32], index: 16, kind: input, shape index: {}]
  %s17 = inlined_call_operand.hbm [shape: f32[1,32], index: 17, kind: input, shape index: {}]
  %s18 = inlined_call_operand.hbm [shape: f32[2,16,32], index: 18, kind: output, shape index: {}]
  %s19 = sld [smem:[#allocation0]]
  $region181: #{tpu_custom_call.1} parent=0
    _
  %s21 = ssub.s32 1, %s19
  %s22 = scalar_select 0, %s21, %s19
  $region1: #{tpu_custom_call.1} parent=0
    #allocation4 [shape = 'u8[16384]{0}', space=vmem, size = 0x4000, scoped, tag = 'input window, operand 0']
    #allocation5 [shape = 's32[2]{0}', space=sflag, size = 0x8, scoped, tag = 'scoped memory for tpu_custom_call.1']
    #allocation6 [shape = 's32[2]{0}', space=sflag, size = 0x8, scoped, tag = 'scoped memory for tpu_custom_call.1']
    #allocation7 [shape = 'u8[16384]{0}', space=vmem, size = 0x4000, scoped, tag = 'input window, operand 1']
    #allocation8 [shape = 's32[2]{0}', space=sflag, size = 0x8, scoped, tag = 'scoped memory for tpu_custom_call.1']
    #allocation9 [shape = 'u8[8192]{0}', space=vmem, size = 0x2000, scoped, tag = 'input window, operand 2, single buffered']
    #allocation10 [shape = 'u8[512]{0}', space=vmem, size = 0x400, scoped, tag = 'input window, operand 3, single buffered']
    #allocation11 [shape = 's32[1]{0}', space=sflag, size = 0x4, scoped, tag = 'scoped memory for tpu_custom_call.1']
    #allocation12 [shape = 'u8[8192]{0}', space=vmem, size = 0x2000, scoped, tag = 'input window, operand 4, single buffered']
    #allocation13 [shape = 'u8[512]{0}', space=vmem, size = 0x400, scoped, tag = 'input window, operand 5, single buffered']
    #allocation14 [shape = 's32[1]{0}', space=sflag, size = 0x4, scoped, tag = 'scoped memory for tpu_custom_call.1']
    #allocation15 [shape = 'u8[8192]{0}', space=vmem, size = 0x2000, scoped, tag = 'input window, operand 6, single buffered']
    #allocation16 [shape = 'u8[512]{0}', space=vmem, size = 0x400, scoped, tag = 'input window, operand 7, single buffered']
    #allocation17 [shape = 's32[1]{0}', space=sflag, size = 0x4, scoped, tag = 'scoped memory for tpu_custom_call.1']
    #allocation18 [shape = 'u8[8192]{0}', space=vmem, size = 0x2000, scoped, tag = 'input window, operand 8, single buffered']
    #allocation19 [shape = 'u8[512]{0}', space=vmem, size = 0x400, scoped, tag = 'input window, operand 9, single buffered']
    #allocation20 [shape = 's32[1]{0}', space=sflag, size = 0x4, scoped, tag = 'scoped memory for tpu_custom_call.1']
    #allocation21 [shape = 'u8[8192]{0}', space=vmem, size = 0x2000, scoped, tag = 'input window, operand 10, single buffered']
    #allocation22 [shape = 'u8[512]{0}', space=vmem, size = 0x400, scoped, tag = 'input window, operand 11, single buffered']
    #allocation23 [shape = 's32[1]{0}', space=sflag, size = 0x4, scoped, tag = 'scoped memory for tpu_custom_call.1']
    #allocation24 [shape = 'u8[16384]{0}', space=vmem, size = 0x4000, scoped, tag = 'input window, operand 12, single buffered']
    #allocation25 [shape = 'u8[512]{0}', space=vmem, size = 0x400, scoped, tag = 'input window, operand 13, single buffered']
    #allocation26 [shape = 's32[1]{0}', space=sflag, size = 0x4, scoped, tag = 'scoped memory for tpu_custom_call.1']
    #allocation27 [shape = 'u8[512]{0}', space=vmem, size = 0x400, scoped, tag = 'input window, operand 14, single buffered']
    #allocation28 [shape = 'u8[512]{0}', space=vmem, size = 0x400, scoped, tag = 'input window, operand 15, single buffered']
    #allocation29 [shape = 's32[1]{0}', space=sflag, size = 0x4, scoped, tag = 'scoped memory for tpu_custom_call.1']
    #allocation30 [shape = 'u8[512]{0}', space=vmem, size = 0x400, scoped, tag = 'input window, operand 16, single buffered']
    #allocation31 [shape = 'u8[512]{0}', space=vmem, size = 0x400, scoped, tag = 'input window, operand 17, single buffered']
    #allocation32 [shape = 's32[1]{0}', space=sflag, size = 0x4, scoped, tag = 'scoped memory for tpu_custom_call.1']
    #allocation33 [shape = 'u8[8192]{0}', space=vmem, size = 0x2000, scoped, tag = 'output window, operand 0']
    %23 = vsyncpa [#allocation5], 0
    %s24 = scalar_lea.sflag [#allocation5], 1
    %25 = vsyncpa %s24, 0
    %26 = vsyncpa [#allocation8], 0
    %s27 = scalar_lea.sflag [#allocation8], 1
    %28 = vsyncpa %s27, 0
    %29 = vsyncpa [#allocation11], 0
    %30 = vsyncpa [#allocation14], 0
    %31 = vsyncpa [#allocation17], 0
    %32 = vsyncpa [#allocation20], 0
    %33 = vsyncpa [#allocation23], 0
    %34 = vsyncpa [#allocation26], 0
    %35 = vsyncpa [#allocation29], 0
    %36 = vsyncpa [#allocation32], 0
    %37 = vsyncpa [#allocation6], 0
    %s38 = scalar_lea.sflag [#allocation6], 1
    %39 = vsyncpa %s38, 0
    loop: start=0, step=1, limit=6
    $region2: #{tpu_custom_call.1} parent=1 // loop_pre_header
      _
    $region3: #{tpu_custom_call.1} parent=1 // loop_header
      %s41 = sphi 0, %s45
      %p42 = scmp.ge.s32.totalorder %s41, 6
      %s48 = sphi 0, %s60
      %s49 = sphi 0, %s56
      %s50 = sphi 0, %s48
      %s51 = sphi 0, %s49
      %s52 = sphi 0, %s50
      %s53 = sphi 0, %s51
      %s63 = sphi 0, %s65
      %s66 = sphi 0, %s63
      %s67 = sphi 0, %s66
      %s83 = sphi 0, %s67
      %s89 = sphi 0, %s91
      %s92 = sphi 0, %s89
      %s93 = sphi 0, %s92
      %s109 = sphi 0, %s93
      %s113 = sphi 0, %s113
      %s115 = sphi 0, %s113
      %s116 = sphi 0, %s115
      %s130 = sphi 0, %s116
      %s134 = sphi 0, %s134
      %s136 = sphi 0, %s134
      %s137 = sphi 0, %s136
      %s151 = sphi 0, %s137
      %s155 = sphi 0, %s155
      %s157 = sphi 0, %s155
      %s158 = sphi 0, %s157
      %s172 = sphi 0, %s158
      %s176 = sphi 0, %s176
      %s178 = sphi 0, %s176
      %s179 = sphi 0, %s178
      %s193 = sphi 0, %s179
      %s197 = sphi 0, %s197
      %s199 = sphi 0, %s197
      %s200 = sphi 0, %s199
      %s214 = sphi 0, %s200
      %s218 = sphi 0, %s218
      %s220 = sphi 0, %s218
      %s221 = sphi 0, %s220
      %s235 = sphi 0, %s221
      %s239 = sphi 0, %s239
      %s241 = sphi 0, %s239
      %s242 = sphi 0, %s241
      %s256 = sphi 0, %s242
      %s260 = sphi 0, %s260
      %s262 = sphi 0, %s260
      %s263 = sphi 0, %s262
      %s277 = sphi 0, %s263
      %s281 = sphi 0, %s281
      %s283 = sphi 0, %s281
      %s284 = sphi 0, %s283
      %s298 = sphi 0, %s284
      %s302 = sphi 0, %s302
      %s304 = sphi 0, %s302
      %s305 = sphi 0, %s304
      %s319 = sphi 0, %s305
      %s323 = sphi 0, %s323
      %s325 = sphi 0, %s323
      %s326 = sphi 0, %s325
      %s340 = sphi 0, %s326
      %s344 = sphi 0, %s344
      %s346 = sphi 0, %s344
      %s347 = sphi 0, %s346
      %s361 = sphi 0, %s347
      %s365 = sphi 0, %s365
      %s367 = sphi 0, %s365
      %s368 = sphi 0, %s367
      %s382 = sphi 0, %s368
      %s386 = sphi 0, %s386
      %s388 = sphi 0, %s386
      %s389 = sphi 0, %s388
      %s403 = sphi 0, %s389
      %s407 = sphi 0, %s407
      %s409 = sphi 0, %s407
      %s410 = sphi 0, %s409
      %s424 = sphi 0, %s410
      %s428 = sphi 0, %s428
      %s430 = sphi 0, %s428
      %s431 = sphi 0, %s430
      %s445 = sphi 0, %s431
      %s453 = sphi 0, %s455
      %s456 = sphi 0, %s453
      %s457 = sphi 0, %s456
      %s473 = sphi 0, %s457
    $region4: #{tpu_custom_call.1} parent=1 // loop_header_branch
      %44 = sbr.rel (%p42) target = $region8
    $region5: #{tpu_custom_call.1} parent=1 // loop_body
      %s46 = ssub.s32 %s41, 1
      %s47 = ssub.s32 %s41, 2
      %s54 = sadd.s32 1, %s49
      %p55 = scmp.ge.s32.totalorder %s54, 2
      %s56 = scalar_select %p55, 0, %s54
      %s57 = sadd.s32 1, %s48
      %s58 = scalar_select %p55, %s57, %s48
      %p59 = scmp.ge.s32.totalorder %s58, 2
      %s60 = scalar_select %p59, 0, %s58
      %s61 = ssub.s32 %s48, %s60
      %p62 = scmp.eq.s32.totalorder %s61, 0
      %s64 = sadd.s32 %s63, 1
      %s65 = scalar_select %p62, %s63, %s64
      %p68 = pneg %p62
      %p69 = scmp.eq.s32.totalorder %s41, 3
      %p70 = por %p68, %p69
      %p71 = scmp.ne.s32.totalorder %s63, %s66
      %p72 = scmp.eq.s32.totalorder %s41, 0
      %p73 = por %p71, %p72
      %p74 = scmp.ne.s32.totalorder %s63, %s66
      %p75 = scmp.eq.s32.totalorder %s46, 3
      %p76 = por %p74, %p75
      %p77 = scmp.ne.s32.totalorder %s66, %s67
      %p78 = scmp.eq.s32.totalorder %s46, 0
      %p79 = por %p77, %p78
      %p80 = scmp.ne.s32.totalorder %s66, %s67
      %p81 = scmp.eq.s32.totalorder %s47, 3
      %p82 = por %p80, %p81
      %p84 = scmp.ne.s32.totalorder %s67, %s83
      %p85 = scmp.eq.s32.totalorder %s47, 0
      %p86 = por %p84, %p85
      %s87 = ssub.s32 %s48, %s60
      %p88 = scmp.eq.s32.totalorder %s87, 0
      %s90 = sadd.s32 %s89, 1
      %s91 = scalar_select %p88, %s89, %s90
      %p94 = pneg %p88
      %p95 = scmp.eq.s32.totalorder %s41, 3
      %p96 = por %p94, %p95
      %p97 = scmp.ne.s32.totalorder %s89, %s92
      %p98 = scmp.eq.s32.totalorder %s41, 0
      %p99 = por %p97, %p98
      %p100 = scmp.ne.s32.totalorder %s89, %s92
      %p101 = scmp.eq.s32.totalorder %s46, 3
      %p102 = por %p100, %p101
      %p103 = scmp.ne.s32.totalorder %s92, %s93
      %p104 = scmp.eq.s32.totalorder %s46, 0
      %p105 = por %p103, %p104
      %p106 = scmp.ne.s32.totalorder %s92, %s93
      %p107 = scmp.eq.s32.totalorder %s47, 3
      %p108 = por %p106, %p107
      %p110 = scmp.ne.s32.totalorder %s93, %s109
      %p111 = scmp.eq.s32.totalorder %s47, 0
      %p112 = por %p110, %p111
      %s114 = sadd.s32 %s113, 1
      %p117 = scmp.eq.s32.totalorder %s41, 3
      %p118 = scmp.ne.s32.totalorder %s113, %s115
      %p119 = scmp.eq.s32.totalorder %s41, 0
      %p120 = por %p118, %p119
      %p121 = scmp.ne.s32.totalorder %s113, %s115
      %p122 = scmp.eq.s32.totalorder %s46, 3
      %p123 = por %p121, %p122
      %p124 = scmp.ne.s32.totalorder %s115, %s116
      %p125 = scmp.eq.s32.totalorder %s46, 0
      %p126 = por %p124, %p125
      %p127 = scmp.ne.s32.totalorder %s115, %s116
      %p128 = scmp.eq.s32.totalorder %s47, 3
      %p129 = por %p127, %p128
      %p131 = scmp.ne.s32.totalorder %s116, %s130
      %p132 = scmp.eq.s32.totalorder %s47, 0
      %p133 = por %p131, %p132
      %s135 = sadd.s32 %s134, 1
      %p138 = scmp.eq.s32.totalorder %s41, 3
      %p139 = scmp.ne.s32.totalorder %s134, %s136
      %p140 = scmp.eq.s32.totalorder %s41, 0
      %p141 = por %p139, %p140
      %p142 = scmp.ne.s32.totalorder %s134, %s136
      %p143 = scmp.eq.s32.totalorder %s46, 3
      %p144 = por %p142, %p143
      %p145 = scmp.ne.s32.totalorder %s136, %s137
      %p146 = scmp.eq.s32.totalorder %s46, 0
      %p147 = por %p145, %p146
      %p148 = scmp.ne.s32.totalorder %s136, %s137
      %p149 = scmp.eq.s32.totalorder %s47, 3
      %p150 = por %p148, %p149
      %p152 = scmp.ne.s32.totalorder %s137, %s151
      %p153 = scmp.eq.s32.totalorder %s47, 0
      %p154 = por %p152, %p153
      %s156 = sadd.s32 %s155, 1
      %p159 = scmp.eq.s32.totalorder %s41, 3
      %p160 = scmp.ne.s32.totalorder %s155, %s157
      %p161 = scmp.eq.s32.totalorder %s41, 0
      %p162 = por %p160, %p161
      %p163 = scmp.ne.s32.totalorder %s155, %s157
      %p164 = scmp.eq.s32.totalorder %s46, 3
      %p165 = por %p163, %p164
      %p166 = scmp.ne.s32.totalorder %s157, %s158
      %p167 = scmp.eq.s32.totalorder %s46, 0
      %p168 = por %p166, %p167
      %p169 = scmp.ne.s32.totalorder %s157, %s158
      %p170 = scmp.eq.s32.totalorder %s47, 3
      %p171 = por %p169, %p170
      %p173 = scmp.ne.s32.totalorder %s158, %s172
      %p174 = scmp.eq.s32.totalorder %s47, 0
      %p175 = por %p173, %p174
      %s177 = sadd.s32 %s176, 1
      %p180 = scmp.eq.s32.totalorder %s41, 3
      %p181 = scmp.ne.s32.totalorder %s176, %s178
      %p182 = scmp.eq.s32.totalorder %s41, 0
      %p183 = por %p181, %p182
      %p184 = scmp.ne.s32.totalorder %s176, %s178
      %p185 = scmp.eq.s32.totalorder %s46, 3
      %p186 = por %p184, %p185
      %p187 = scmp.ne.s32.totalorder %s178, %s179
      %p188 = scmp.eq.s32.totalorder %s46, 0
      %p189 = por %p187, %p188
      %p190 = scmp.ne.s32.totalorder %s178, %s179
      %p191 = scmp.eq.s32.totalorder %s47, 3
      %p192 = por %p190, %p191
      %p194 = scmp.ne.s32.totalorder %s179, %s193
      %p195 = scmp.eq.s32.totalorder %s47, 0
      %p196 = por %p194, %p195
      %s198 = sadd.s32 %s197, 1
      %p201 = scmp.eq.s32.totalorder %s41, 3
      %p202 = scmp.ne.s32.totalorder %s197, %s199
      %p203 = scmp.eq.s32.totalorder %s41, 0
      %p204 = por %p202, %p203
      %p205 = scmp.ne.s32.totalorder %s197, %s199
      %p206 = scmp.eq.s32.totalorder %s46, 3
      %p207 = por %p205, %p206
      %p208 = scmp.ne.s32.totalorder %s199, %s200
      %p209 = scmp.eq.s32.totalorder %s46, 0
      %p210 = por %p208, %p209
      %p211 = scmp.ne.s32.totalorder %s199, %s200
      %p212 = scmp.eq.s32.totalorder %s47, 3
      %p213 = por %p211, %p212
      %p215 = scmp.ne.s32.totalorder %s200, %s214
      %p216 = scmp.eq.s32.totalorder %s47, 0
      %p217 = por %p215, %p216
      %s219 = sadd.s32 %s218, 1
      %p222 = scmp.eq.s32.totalorder %s41, 3
      %p223 = scmp.ne.s32.totalorder %s218, %s220
      %p224 = scmp.eq.s32.totalorder %s41, 0
      %p225 = por %p223, %p224
      %p226 = scmp.ne.s32.totalorder %s218, %s220
      %p227 = scmp.eq.s32.totalorder %s46, 3
      %p228 = por %p226, %p227
      %p229 = scmp.ne.s32.totalorder %s220, %s221
      %p230 = scmp.eq.s32.totalorder %s46, 0
      %p231 = por %p229, %p230
      %p232 = scmp.ne.s32.totalorder %s220, %s221
      %p233 = scmp.eq.s32.totalorder %s47, 3
      %p234 = por %p232, %p233
      %p236 = scmp.ne.s32.totalorder %s221, %s235
      %p237 = scmp.eq.s32.totalorder %s47, 0
      %p238 = por %p236, %p237
      %s240 = sadd.s32 %s239, 1
      %p243 = scmp.eq.s32.totalorder %s41, 3
      %p244 = scmp.ne.s32.totalorder %s239, %s241
      %p245 = scmp.eq.s32.totalorder %s41, 0
      %p246 = por %p244, %p245
      %p247 = scmp.ne.s32.totalorder %s239, %s241
      %p248 = scmp.eq.s32.totalorder %s46, 3
      %p249 = por %p247, %p248
      %p250 = scmp.ne.s32.totalorder %s241, %s242
      %p251 = scmp.eq.s32.totalorder %s46, 0
      %p252 = por %p250, %p251
      %p253 = scmp.ne.s32.totalorder %s241, %s242
      %p254 = scmp.eq.s32.totalorder %s47, 3
      %p255 = por %p253, %p254
      %p257 = scmp.ne.s32.totalorder %s242, %s256
      %p258 = scmp.eq.s32.totalorder %s47, 0
      %p259 = por %p257, %p258
      %s261 = sadd.s32 %s260, 1
      %p264 = scmp.eq.s32.totalorder %s41, 3
      %p265 = scmp.ne.s32.totalorder %s260, %s262
      %p266 = scmp.eq.s32.totalorder %s41, 0
      %p267 = por %p265, %p266
      %p268 = scmp.ne.s32.totalorder %s260, %s262
      %p269 = scmp.eq.s32.totalorder %s46, 3
      %p270 = por %p268, %p269
      %p271 = scmp.ne.s32.totalorder %s262, %s263
      %p272 = scmp.eq.s32.totalorder %s46, 0
      %p273 = por %p271, %p272
      %p274 = scmp.ne.s32.totalorder %s262, %s263
      %p275 = scmp.eq.s32.totalorder %s47, 3
      %p276 = por %p274, %p275
      %p278 = scmp.ne.s32.totalorder %s263, %s277
      %p279 = scmp.eq.s32.totalorder %s47, 0
      %p280 = por %p278, %p279
      %s282 = sadd.s32 %s281, 1
      %p285 = scmp.eq.s32.totalorder %s41, 3
      %p286 = scmp.ne.s32.totalorder %s281, %s283
      %p287 = scmp.eq.s32.totalorder %s41, 0
      %p288 = por %p286, %p287
      %p289 = scmp.ne.s32.totalorder %s281, %s283
      %p290 = scmp.eq.s32.totalorder %s46, 3
      %p291 = por %p289, %p290
      %p292 = scmp.ne.s32.totalorder %s283, %s284
      %p293 = scmp.eq.s32.totalorder %s46, 0
      %p294 = por %p292, %p293
      %p295 = scmp.ne.s32.totalorder %s283, %s284
      %p296 = scmp.eq.s32.totalorder %s47, 3
      %p297 = por %p295, %p296
      %p299 = scmp.ne.s32.totalorder %s284, %s298
      %p300 = scmp.eq.s32.totalorder %s47, 0
      %p301 = por %p299, %p300
      %s303 = sadd.s32 %s302, 1
      %p306 = scmp.eq.s32.totalorder %s41, 3
      %p307 = scmp.ne.s32.totalorder %s302, %s304
      %p308 = scmp.eq.s32.totalorder %s41, 0
      %p309 = por %p307, %p308
      %p310 = scmp.ne.s32.totalorder %s302, %s304
      %p311 = scmp.eq.s32.totalorder %s46, 3
      %p312 = por %p310, %p311
      %p313 = scmp.ne.s32.totalorder %s304, %s305
      %p314 = scmp.eq.s32.totalorder %s46, 0
      %p315 = por %p313, %p314
      %p316 = scmp.ne.s32.totalorder %s304, %s305
      %p317 = scmp.eq.s32.totalorder %s47, 3
      %p318 = por %p316, %p317
      %p320 = scmp.ne.s32.totalorder %s305, %s319
      %p321 = scmp.eq.s32.totalorder %s47, 0
      %p322 = por %p320, %p321
      %s324 = sadd.s32 %s323, 1
      %p327 = scmp.eq.s32.totalorder %s41, 3
      %p328 = scmp.ne.s32.totalorder %s323, %s325
      %p329 = scmp.eq.s32.totalorder %s41, 0
      %p330 = por %p328, %p329
      %p331 = scmp.ne.s32.totalorder %s323, %s325
      %p332 = scmp.eq.s32.totalorder %s46, 3
      %p333 = por %p331, %p332
      %p334 = scmp.ne.s32.totalorder %s325, %s326
      %p335 = scmp.eq.s32.totalorder %s46, 0
      %p336 = por %p334, %p335
      %p337 = scmp.ne.s32.totalorder %s325, %s326
      %p338 = scmp.eq.s32.totalorder %s47, 3
      %p339 = por %p337, %p338
      %p341 = scmp.ne.s32.totalorder %s326, %s340
      %p342 = scmp.eq.s32.totalorder %s47, 0
      %p343 = por %p341, %p342
      %s345 = sadd.s32 %s344, 1
      %p348 = scmp.eq.s32.totalorder %s41, 3
      %p349 = scmp.ne.s32.totalorder %s344, %s346
      %p350 = scmp.eq.s32.totalorder %s41, 0
      %p351 = por %p349, %p350
      %p352 = scmp.ne.s32.totalorder %s344, %s346
      %p353 = scmp.eq.s32.totalorder %s46, 3
      %p354 = por %p352, %p353
      %p355 = scmp.ne.s32.totalorder %s346, %s347
      %p356 = scmp.eq.s32.totalorder %s46, 0
      %p357 = por %p355, %p356
      %p358 = scmp.ne.s32.totalorder %s346, %s347
      %p359 = scmp.eq.s32.totalorder %s47, 3
      %p360 = por %p358, %p359
      %p362 = scmp.ne.s32.totalorder %s347, %s361
      %p363 = scmp.eq.s32.totalorder %s47, 0
      %p364 = por %p362, %p363
      %s366 = sadd.s32 %s365, 1
      %p369 = scmp.eq.s32.totalorder %s41, 3
      %p370 = scmp.ne.s32.totalorder %s365, %s367
      %p371 = scmp.eq.s32.totalorder %s41, 0
      %p372 = por %p370, %p371
      %p373 = scmp.ne.s32.totalorder %s365, %s367
      %p374 = scmp.eq.s32.totalorder %s46, 3
      %p375 = por %p373, %p374
      %p376 = scmp.ne.s32.totalorder %s367, %s368
      %p377 = scmp.eq.s32.totalorder %s46, 0
      %p378 = por %p376, %p377
      %p379 = scmp.ne.s32.totalorder %s367, %s368
      %p380 = scmp.eq.s32.totalorder %s47, 3
      %p381 = por %p379, %p380
      %p383 = scmp.ne.s32.totalorder %s368, %s382
      %p384 = scmp.eq.s32.totalorder %s47, 0
      %p385 = por %p383, %p384
      %s387 = sadd.s32 %s386, 1
      %p390 = scmp.eq.s32.totalorder %s41, 3
      %p391 = scmp.ne.s32.totalorder %s386, %s388
      %p392 = scmp.eq.s32.totalorder %s41, 0
      %p393 = por %p391, %p392
      %p394 = scmp.ne.s32.totalorder %s386, %s388
      %p395 = scmp.eq.s32.totalorder %s46, 3
      %p396 = por %p394, %p395
      %p397 = scmp.ne.s32.totalorder %s388, %s389
      %p398 = scmp.eq.s32.totalorder %s46, 0
      %p399 = por %p397, %p398
      %p400 = scmp.ne.s32.totalorder %s388, %s389
      %p401 = scmp.eq.s32.totalorder %s47, 3
      %p402 = por %p400, %p401
      %p404 = scmp.ne.s32.totalorder %s389, %s403
      %p405 = scmp.eq.s32.totalorder %s47, 0
      %p406 = por %p404, %p405
      %s408 = sadd.s32 %s407, 1
      %p411 = scmp.eq.s32.totalorder %s41, 3
      %p412 = scmp.ne.s32.totalorder %s407, %s409
      %p413 = scmp.eq.s32.totalorder %s41, 0
      %p414 = por %p412, %p413
      %p415 = scmp.ne.s32.totalorder %s407, %s409
      %p416 = scmp.eq.s32.totalorder %s46, 3
      %p417 = por %p415, %p416
      %p418 = scmp.ne.s32.totalorder %s409, %s410
      %p419 = scmp.eq.s32.totalorder %s46, 0
      %p420 = por %p418, %p419
      %p421 = scmp.ne.s32.totalorder %s409, %s410
      %p422 = scmp.eq.s32.totalorder %s47, 3
      %p423 = por %p421, %p422
      %p425 = scmp.ne.s32.totalorder %s410, %s424
      %p426 = scmp.eq.s32.totalorder %s47, 0
      %p427 = por %p425, %p426
      %s429 = sadd.s32 %s428, 1
      %p432 = scmp.eq.s32.totalorder %s41, 3
      %p433 = scmp.ne.s32.totalorder %s428, %s430
      %p434 = scmp.eq.s32.totalorder %s41, 0
      %p435 = por %p433, %p434
      %p436 = scmp.ne.s32.totalorder %s428, %s430
      %p437 = scmp.eq.s32.totalorder %s46, 3
      %p438 = por %p436, %p437
      %p439 = scmp.ne.s32.totalorder %s430, %s431
      %p440 = scmp.eq.s32.totalorder %s46, 0
      %p441 = por %p439, %p440
      %p442 = scmp.ne.s32.totalorder %s430, %s431
      %p443 = scmp.eq.s32.totalorder %s47, 3
      %p444 = por %p442, %p443
      %p446 = scmp.ne.s32.totalorder %s431, %s445
      %p447 = scmp.eq.s32.totalorder %s47, 0
      %p448 = por %p446, %p447
      %s449 = ssub.s32 %s48, %s60
      %s450 = ssub.s32 %s49, %s56
      %s451 = sor.u32 %s449, %s450
      %p452 = scmp.eq.s32.totalorder %s451, 0
      %s454 = sadd.s32 %s453, 1
      %s455 = scalar_select %p452, %s453, %s454
      %p458 = pneg %p452
      %p459 = scmp.eq.s32.totalorder %s41, 3
      %p460 = por %p458, %p459
      %p461 = scmp.ne.s32.totalorder %s453, %s456
      %p462 = scmp.eq.s32.totalorder %s41, 0
      %p463 = por %p461, %p462
      %p464 = scmp.ne.s32.totalorder %s453, %s456
      %p465 = scmp.eq.s32.totalorder %s46, 3
      %p466 = por %p464, %p465
      %p467 = scmp.ne.s32.totalorder %s456, %s457
      %p468 = scmp.eq.s32.totalorder %s46, 0
      %p469 = por %p467, %p468
      %p470 = scmp.ne.s32.totalorder %s456, %s457
      %p471 = scmp.eq.s32.totalorder %s47, 3
      %p472 = por %p470, %p471
      %p474 = scmp.ne.s32.totalorder %s457, %s473
      %p475 = scmp.eq.s32.totalorder %s47, 0
      %p476 = por %p474, %p475
      %p477 = scmp.le.s32.totalorder 1, %s41
      %p478 = scmp.lt.s32.totalorder %s41, 5
      %p479 = pnand %p477, %p478
      %p480 = pneg %p479
      // Predicated region
      $region9: #{tpu_custom_call.1} parent=5 // pred_check
        _
      $region10: #{tpu_custom_call.1} parent=5 // pred_check_branch
        %482 = sbr.rel (%p479) target = $region12
      $region11: #{tpu_custom_call.1} parent=5 // pred_region
        %s483 = ssub.s32 %s41, 1
        // Predicated region
        $region13: #{tpu_custom_call.1} parent=11 // pred_check
          %p484 = pneg %p126
        $region14: #{tpu_custom_call.1} parent=11 // pred_check_branch
          %486 = sbr.rel (%p484) target = $region16
        $region15: #{tpu_custom_call.1} parent=11 // pred_region
          %s488 = ssub.s32 256, 256
          %489 = vsyncadd [#allocation8], %s488
          %s490 = sshll.u32 [#allocation9], 4
          %s491 = int_to_ptr.vmem [resolvable:$true] %s490
          %496 = dma.hbm_to_vmem [thread:$0]  %s2, 256, %s491, [#allocation8], 64, 64, 4
        $region16: #{tpu_custom_call.1} parent=11 // pred_fallthru
          _
        // Predicated region
        $region17: #{tpu_custom_call.1} parent=11 // pred_check
          %p497 = pneg %p147
        $region18: #{tpu_custom_call.1} parent=11 // pred_check_branch
          %499 = sbr.rel (%p497) target = $region20
        $region19: #{tpu_custom_call.1} parent=11 // pred_region
          %s501 = ssub.s32 16, 16
          %502 = vsyncadd [#allocation11], %s501
          %s504 = sshll.u32 [#allocation10], 4
          %s505 = int_to_ptr.vmem [resolvable:$true] %s504
          %507 = dma.hbm_to_vmem [thread:$0]  %s3, 16, %s505, [#allocation11]
        $region20: #{tpu_custom_call.1} parent=11 // pred_fallthru
          _
        // Predicated region
        $region21: #{tpu_custom_call.1} parent=11 // pred_check
          %p508 = pneg %p168
        $region22: #{tpu_custom_call.1} parent=11 // pred_check_branch
          %510 = sbr.rel (%p508) target = $region24
        $region23: #{tpu_custom_call.1} parent=11 // pred_region
          %s512 = ssub.s32 256, 256
          %513 = vsyncadd [#allocation11], %s512
          %s514 = sshll.u32 [#allocation12], 4
          %s515 = int_to_ptr.vmem [resolvable:$true] %s514
          %520 = dma.hbm_to_vmem [thread:$0]  %s4, 256, %s515, [#allocation11], 64, 64, 4
        $region24: #{tpu_custom_call.1} parent=11 // pred_fallthru
          _
        // Predicated region
        $region25: #{tpu_custom_call.1} parent=11 // pred_check
          %p521 = pneg %p189
        $region26: #{tpu_custom_call.1} parent=11 // pred_check_branch
          %523 = sbr.rel (%p521) target = $region28
        $region27: #{tpu_custom_call.1} parent=11 // pred_region
          %s525 = ssub.s32 16, 16
          %526 = vsyncadd [#allocation14], %s525
          %s528 = sshll.u32 [#allocation13], 4
          %s529 = int_to_ptr.vmem [resolvable:$true] %s528
          %531 = dma.hbm_to_vmem [thread:$0]  %s5, 16, %s529, [#allocation14]
        $region28: #{tpu_custom_call.1} parent=11 // pred_fallthru
          _
        // Predicated region
        $region29: #{tpu_custom_call.1} parent=11 // pred_check
          %p532 = pneg %p210
        $region30: #{tpu_custom_call.1} parent=11 // pred_check_branch
          %534 = sbr.rel (%p532) target = $region32
        $region31: #{tpu_custom_call.1} parent=11 // pred_region
          %s536 = ssub.s32 256, 256
          %537 = vsyncadd [#allocation14], %s536
          %s538 = sshll.u32 [#allocation15], 4
          %s539 = int_to_ptr.vmem [resolvable:$true] %s538
          %544 = dma.hbm_to_vmem [thread:$0]  %s6, 256, %s539, [#allocation14], 64, 64, 4
        $region32: #{tpu_custom_call.1} parent=11 // pred_fallthru
          _
        // Predicated region
        $region33: #{tpu_custom_call.1} parent=11 // pred_check
          %p545 = pneg %p231
        $region34: #{tpu_custom_call.1} parent=11 // pred_check_branch
          %547 = sbr.rel (%p545) target = $region36
        $region35: #{tpu_custom_call.1} parent=11 // pred_region
          %s549 = ssub.s32 16, 16
          %550 = vsyncadd [#allocation17], %s549
          %s552 = sshll.u32 [#allocation16], 4
          %s553 = int_to_ptr.vmem [resolvable:$true] %s552
          %555 = dma.hbm_to_vmem [thread:$0]  %s7, 16, %s553, [#allocation17]
        $region36: #{tpu_custom_call.1} parent=11 // pred_fallthru
          _
        // Predicated region
        $region37: #{tpu_custom_call.1} parent=11 // pred_check
          %p556 = pneg %p252
        $region38: #{tpu_custom_call.1} parent=11 // pred_check_branch
          %558 = sbr.rel (%p556) target = $region40
        $region39: #{tpu_custom_call.1} parent=11 // pred_region
          %s560 = ssub.s32 256, 256
          %561 = vsyncadd [#allocation17], %s560
          %s562 = sshll.u32 [#allocation18], 4
          %s563 = int_to_ptr.vmem [resolvable:$true] %s562
          %568 = dma.hbm_to_vmem [thread:$0]  %s8, 256, %s563, [#allocation17], 64, 64, 4
        $region40: #{tpu_custom_call.1} parent=11 // pred_fallthru
          _
        // Predicated region
        $region41: #{tpu_custom_call.1} parent=11 // pred_check
          %p569 = pneg %p273
        $region42: #{tpu_custom_call.1} parent=11 // pred_check_branch
          %571 = sbr.rel (%p569) target = $region44
        $region43: #{tpu_custom_call.1} parent=11 // pred_region
          %s573 = ssub.s32 16, 16
          %574 = vsyncadd [#allocation20], %s573
          %s576 = sshll.u32 [#allocation19], 4
          %s577 = int_to_ptr.vmem [resolvable:$true] %s576
          %579 = dma.hbm_to_vmem [thread:$0]  %s9, 16, %s577, [#allocation20]
        $region44: #{tpu_custom_call.1} parent=11 // pred_fallthru
          _
        // Predicated region
        $region45: #{tpu_custom_call.1} parent=11 // pred_check
          %p580 = pneg %p294
        $region46: #{tpu_custom_call.1} parent=11 // pred_check_branch
          %582 = sbr.rel (%p580) target = $region48
        $region47: #{tpu_custom_call.1} parent=11 // pred_region
          %s584 = ssub.s32 256, 256
          %585 = vsyncadd [#allocation20], %s584
          %s586 = sshll.u32 [#allocation21], 4
          %s587 = int_to_ptr.vmem [resolvable:$true] %s586
          %592 = dma.hbm_to_vmem [thread:$0]  %s10, 256, %s587, [#allocation20], 64, 64, 4
        $region48: #{tpu_custom_call.1} parent=11 // pred_fallthru
          _
        // Predicated region
        $region49: #{tpu_custom_call.1} parent=11 // pred_check
          %p593 = pneg %p315
        $region50: #{tpu_custom_call.1} parent=11 // pred_check_branch
          %595 = sbr.rel (%p593) target = $region52
        $region51: #{tpu_custom_call.1} parent=11 // pred_region
          %s597 = ssub.s32 16, 16
          %598 = vsyncadd [#allocation23], %s597
          %s600 = sshll.u32 [#allocation22], 4
          %s601 = int_to_ptr.vmem [resolvable:$true] %s600
          %603 = dma.hbm_to_vmem [thread:$0]  %s11, 16, %s601, [#allocation23]
        $region52: #{tpu_custom_call.1} parent=11 // pred_fallthru
          _
        // Predicated region
        $region53: #{tpu_custom_call.1} parent=11 // pred_check
          %p604 = pneg %p336
        $region54: #{tpu_custom_call.1} parent=11 // pred_check_branch
          %606 = sbr.rel (%p604) target = $region56
        $region55: #{tpu_custom_call.1} parent=11 // pred_region
          %s608 = ssub.s32 512, 512
          %609 = vsyncadd [#allocation23], %s608
          %s610 = sshll.u32 [#allocation24], 4
          %s611 = int_to_ptr.vmem [resolvable:$true] %s610
          %616 = dma.hbm_to_vmem [thread:$0]  %s12, 512, %s611, [#allocation23], 64, 64, 4
        $region56: #{tpu_custom_call.1} parent=11 // pred_fallthru
          _
        // Predicated region
        $region57: #{tpu_custom_call.1} parent=11 // pred_check
          %p617 = pneg %p357
        $region58: #{tpu_custom_call.1} parent=11 // pred_check_branch
          %619 = sbr.rel (%p617) target = $region60
        $region59: #{tpu_custom_call.1} parent=11 // pred_region
          %s621 = ssub.s32 16, 16
          %622 = vsyncadd [#allocation26], %s621
          %s624 = sshll.u32 [#allocation25], 4
          %s625 = int_to_ptr.vmem [resolvable:$true] %s624
          %627 = dma.hbm_to_vmem [thread:$0]  %s13, 16, %s625, [#allocation26]
        $region60: #{tpu_custom_call.1} parent=11 // pred_fallthru
          _
        // Predicated region
        $region61: #{tpu_custom_call.1} parent=11 // pred_check
          %p628 = pneg %p378
        $region62: #{tpu_custom_call.1} parent=11 // pred_check_branch
          %630 = sbr.rel (%p628) target = $region64
        $region63: #{tpu_custom_call.1} parent=11 // pred_region
          %s632 = ssub.s32 16, 16
          %633 = vsyncadd [#allocation26], %s632
          %s635 = sshll.u32 [#allocation27], 4
          %s636 = int_to_ptr.vmem [resolvable:$true] %s635
          %638 = dma.hbm_to_vmem [thread:$0]  %s14, 16, %s636, [#allocation26]
        $region64: #{tpu_custom_call.1} parent=11 // pred_fallthru
          _
        // Predicated region
        $region65: #{tpu_custom_call.1} parent=11 // pred_check
          %p639 = pneg %p399
        $region66: #{tpu_custom_call.1} parent=11 // pred_check_branch
          %641 = sbr.rel (%p639) target = $region68
        $region67: #{tpu_custom_call.1} parent=11 // pred_region
          %s643 = ssub.s32 16, 16
          %644 = vsyncadd [#allocation29], %s643
          %s646 = sshll.u32 [#allocation28], 4
          %s647 = int_to_ptr.vmem [resolvable:$true] %s646
          %649 = dma.hbm_to_vmem [thread:$0]  %s15, 16, %s647, [#allocation29]
        $region68: #{tpu_custom_call.1} parent=11 // pred_fallthru
          _
        // Predicated region
        $region69: #{tpu_custom_call.1} parent=11 // pred_check
          %p650 = pneg %p420
        $region70: #{tpu_custom_call.1} parent=11 // pred_check_branch
          %652 = sbr.rel (%p650) target = $region72
        $region71: #{tpu_custom_call.1} parent=11 // pred_region
          %s654 = ssub.s32 16, 16
          %655 = vsyncadd [#allocation29], %s654
          %s657 = sshll.u32 [#allocation30], 4
          %s658 = int_to_ptr.vmem [resolvable:$true] %s657
          %660 = dma.hbm_to_vmem [thread:$0]  %s16, 16, %s658, [#allocation29]
        $region72: #{tpu_custom_call.1} parent=11 // pred_fallthru
          _
        // Predicated region
        $region73: #{tpu_custom_call.1} parent=11 // pred_check
          %p661 = pneg %p441
        $region74: #{tpu_custom_call.1} parent=11 // pred_check_branch
          %663 = sbr.rel (%p661) target = $region76
        $region75: #{tpu_custom_call.1} parent=11 // pred_region
          %s665 = ssub.s32 16, 16
          %666 = vsyncadd [#allocation32], %s665
          %s668 = sshll.u32 [#allocation31], 4
          %s669 = int_to_ptr.vmem [resolvable:$true] %s668
          %671 = dma.hbm_to_vmem [thread:$0]  %s17, 16, %s669, [#allocation32]
        $region76: #{tpu_custom_call.1} parent=11 // pred_fallthru
          _
      $region12: #{tpu_custom_call.1} parent=5 // pred_fallthru
        _
      %p672 = scmp.lt.s32.totalorder %s41, 4
      // Predicated region
      $region77: #{tpu_custom_call.1} parent=5 // pred_check
        %p673 = pneg %p672
      $region78: #{tpu_custom_call.1} parent=5 // pred_check_branch
        %675 = sbr.rel (%p673) target = $region80
      $region79: #{tpu_custom_call.1} parent=5 // pred_region
        // Predicated region
        $region81: #{tpu_custom_call.1} parent=79 // pred_check
          %p676 = pneg %p73
        $region82: #{tpu_custom_call.1} parent=79 // pred_check_branch
          %678 = sbr.rel (%p676) target = $region84
        $region83: #{tpu_custom_call.1} parent=79 // pred_region
          %s679 = sand.u32 %s63, 1
          %s680 = scalar_lea.sflag [#allocation5], %s679
          %s681 = sand.u32 %s63, 1
          %s682 = smul.addr %s681, 16
          %s683 = scalar_lea.vmem [#allocation4], %s682
          %s685 = ssub.s32 256, 256
          %686 = vsyncadd %s680, %s685
          %s687 = smul.addr %s48, 2
          %s688 = smul.addr %s687, 128
          %s689 = scalar_lea.hbm %s0, %s688
          %s690 = sshll.u32 %s683, 4
          %s691 = int_to_ptr.vmem [resolvable:$true] %s690
          %696 = dma.hbm_to_vmem [thread:$0]  %s689, 256, %s691, %s680, 128, 128, 8
        $region84: #{tpu_custom_call.1} parent=79 // pred_fallthru
          _
        // Predicated region
        $region85: #{tpu_custom_call.1} parent=79 // pred_check
          %p697 = pneg %p99
        $region86: #{tpu_custom_call.1} parent=79 // pred_check_branch
          %699 = sbr.rel (%p697) target = $region88
        $region87: #{tpu_custom_call.1} parent=79 // pred_region
          %s700 = sand.u32 %s41, 1
          %s701 = scalar_lea.sflag [#allocation8], %s700
          %s702 = sand.u32 %s89, 1
          %s703 = smul.addr %s702, 16
          %s704 = scalar_lea.vmem [#allocation7], %s703
          %s706 = ssub.s32 256, 256
          %707 = vsyncadd %s701, %s706
          %s708 = smul.addr %s48, 2
          %s709 = smul.addr %s708, 128
          %s710 = scalar_lea.hbm %s1, %s709
          %s711 = sshll.u32 %s704, 4
          %s712 = int_to_ptr.vmem [resolvable:$true] %s711
          %717 = dma.hbm_to_vmem [thread:$0]  %s710, 256, %s712, %s701, 128, 128, 8
        $region88: #{tpu_custom_call.1} parent=79 // pred_fallthru
          _
      $region80: #{tpu_custom_call.1} parent=5 // pred_fallthru
        _
      %p718 = scmp.le.s32.totalorder 1, %s41
      %p719 = scmp.lt.s32.totalorder %s41, 5
      %p720 = pnand %p718, %p719
      %p721 = pneg %p720
      // Predicated region
      $region89: #{tpu_custom_call.1} parent=5 // pred_check
        _
      $region90: #{tpu_custom_call.1} parent=5 // pred_check_branch
        %723 = sbr.rel (%p720) target = $region92
      $region91: #{tpu_custom_call.1} parent=5 // pred_region
        %s724 = ssub.s32 %s41, 1
        %s725 = sand.u32 %s66, 1
        %s726 = scalar_lea.sflag [#allocation5], %s725
        %s727 = sand.u32 %s66, 1
        %s728 = smul.addr %s727, 16
        %s729 = scalar_lea.vmem [#allocation4], %s728
        // Predicated region
        $region93: #{tpu_custom_call.1} parent=91 // pred_check
          %p730 = pneg %p79
        $region94: #{tpu_custom_call.1} parent=91 // pred_check_branch
          %732 = sbr.rel (%p730) target = $region96
        $region95: #{tpu_custom_call.1} parent=91 // pred_region
          %733 = dma.done %s726, 256
        $region96: #{tpu_custom_call.1} parent=91 // pred_fallthru
          _
        %s734 = sand.u32 %s46, 1
        %s735 = scalar_lea.sflag [#allocation8], %s734
        %s736 = sand.u32 %s92, 1
        %s737 = smul.addr %s736, 16
        %s738 = scalar_lea.vmem [#allocation7], %s737
        // Predicated region
        $region97: #{tpu_custom_call.1} parent=91 // pred_check
          %p739 = pneg %p105
        $region98: #{tpu_custom_call.1} parent=91 // pred_check_branch
          %741 = sbr.rel (%p739) target = $region100
        $region99: #{tpu_custom_call.1} parent=91 // pred_region
          %742 = dma.done %s735, 256
        $region100: #{tpu_custom_call.1} parent=91 // pred_fallthru
          _
        // Predicated region
        $region101: #{tpu_custom_call.1} parent=91 // pred_check
          %p743 = pneg %p126
        $region102: #{tpu_custom_call.1} parent=91 // pred_check_branch
          %745 = sbr.rel (%p743) target = $region104
        $region103: #{tpu_custom_call.1} parent=91 // pred_region
          %746 = dma.done [#allocation8], 256
        $region104: #{tpu_custom_call.1} parent=91 // pred_fallthru
          _
        // Predicated region
        $region105: #{tpu_custom_call.1} parent=91 // pred_check
          %p747 = pneg %p147
        $region106: #{tpu_custom_call.1} parent=91 // pred_check_branch
          %749 = sbr.rel (%p747) target = $region108
        $region107: #{tpu_custom_call.1} parent=91 // pred_region
          %750 = dma.done [#allocation11], 16
        $region108: #{tpu_custom_call.1} parent=91 // pred_fallthru
          _
        // Predicated region
        $region109: #{tpu_custom_call.1} parent=91 // pred_check
          %p751 = pneg %p168
        $region110: #{tpu_custom_call.1} parent=91 // pred_check_branch
          %753 = sbr.rel (%p751) target = $region112
        $region111: #{tpu_custom_call.1} parent=91 // pred_region
          %754 = dma.done [#allocation11], 256
        $region112: #{tpu_custom_call.1} parent=91 // pred_fallthru
          _
        // Predicated region
        $region113: #{tpu_custom_call.1} parent=91 // pred_check
          %p755 = pneg %p189
        $region114: #{tpu_custom_call.1} parent=91 // pred_check_branch
          %757 = sbr.rel (%p755) target = $region116
        $region115: #{tpu_custom_call.1} parent=91 // pred_region
          %758 = dma.done [#allocation14], 16
        $region116: #{tpu_custom_call.1} parent=91 // pred_fallthru
          _
        // Predicated region
        $region117: #{tpu_custom_call.1} parent=91 // pred_check
          %p759 = pneg %p210
        $region118: #{tpu_custom_call.1} parent=91 // pred_check_branch
          %761 = sbr.rel (%p759) target = $region120
        $region119: #{tpu_custom_call.1} parent=91 // pred_region
          %762 = dma.done [#allocation14], 256
        $region120: #{tpu_custom_call.1} parent=91 // pred_fallthru
          _
        // Predicated region
        $region121: #{tpu_custom_call.1} parent=91 // pred_check
          %p763 = pneg %p231
        $region122: #{tpu_custom_call.1} parent=91 // pred_check_branch
          %765 = sbr.rel (%p763) target = $region124
        $region123: #{tpu_custom_call.1} parent=91 // pred_region
          %766 = dma.done [#allocation17], 16
        $region124: #{tpu_custom_call.1} parent=91 // pred_fallthru
          _
        // Predicated region
        $region125: #{tpu_custom_call.1} parent=91 // pred_check
          %p767 = pneg %p252
        $region126: #{tpu_custom_call.1} parent=91 // pred_check_branch
          %769 = sbr.rel (%p767) target = $region128
        $region127: #{tpu_custom_call.1} parent=91 // pred_region
          %770 = dma.done [#allocation17], 256
        $region128: #{tpu_custom_call.1} parent=91 // pred_fallthru
          _
        // Predicated region
        $region129: #{tpu_custom_call.1} parent=91 // pred_check
          %p771 = pneg %p273
        $region130: #{tpu_custom_call.1} parent=91 // pred_check_branch
          %773 = sbr.rel (%p771) target = $region132
        $region131: #{tpu_custom_call.1} parent=91 // pred_region
          %774 = dma.done [#allocation20], 16
        $region132: #{tpu_custom_call.1} parent=91 // pred_fallthru
          _
        // Predicated region
        $region133: #{tpu_custom_call.1} parent=91 // pred_check
          %p775 = pneg %p294
        $region134: #{tpu_custom_call.1} parent=91 // pred_check_branch
          %777 = sbr.rel (%p775) target = $region136
        $region135: #{tpu_custom_call.1} parent=91 // pred_region
          %778 = dma.done [#allocation20], 256
        $region136: #{tpu_custom_call.1} parent=91 // pred_fallthru
          _
        // Predicated region
        $region137: #{tpu_custom_call.1} parent=91 // pred_check
          %p779 = pneg %p315
        $region138: #{tpu_custom_call.1} parent=91 // pred_check_branch
          %781 = sbr.rel (%p779) target = $region140
        $region139: #{tpu_custom_call.1} parent=91 // pred_region
          %782 = dma.done [#allocation23], 16
        $region140: #{tpu_custom_call.1} parent=91 // pred_fallthru
          _
        // Predicated region
        $region141: #{tpu_custom_call.1} parent=91 // pred_check
          %p783 = pneg %p336
        $region142: #{tpu_custom_call.1} parent=91 // pred_check_branch
          %785 = sbr.rel (%p783) target = $region144
        $region143: #{tpu_custom_call.1} parent=91 // pred_region
          %786 = dma.done [#allocation23], 512
        $region144: #{tpu_custom_call.1} parent=91 // pred_fallthru
          _
        // Predicated region
        $region145: #{tpu_custom_call.1} parent=91 // pred_check
          %p787 = pneg %p357
        $region146: #{tpu_custom_call.1} parent=91 // pred_check_branch
          %789 = sbr.rel (%p787) target = $region148
        $region147: #{tpu_custom_call.1} parent=91 // pred_region
          %790 = dma.done [#allocation26], 16
        $region148: #{tpu_custom_call.1} parent=91 // pred_fallthru
          _
        // Predicated region
        $region149: #{tpu_custom_call.1} parent=91 // pred_check
          %p791 = pneg %p378
        $region150: #{tpu_custom_call.1} parent=91 // pred_check_branch
          %793 = sbr.rel (%p791) target = $region152
        $region151: #{tpu_custom_call.1} parent=91 // pred_region
          %794 = dma.done [#allocation26], 16
        $region152: #{tpu_custom_call.1} parent=91 // pred_fallthru
          _
        // Predicated region
        $region153: #{tpu_custom_call.1} parent=91 // pred_check
          %p795 = pneg %p399
        $region154: #{tpu_custom_call.1} parent=91 // pred_check_branch
          %797 = sbr.rel (%p795) target = $region156
        $region155: #{tpu_custom_call.1} parent=91 // pred_region
          %798 = dma.done [#allocation29], 16
        $region156: #{tpu_custom_call.1} parent=91 // pred_fallthru
          _
        // Predicated region
        $region157: #{tpu_custom_call.1} parent=91 // pred_check
          %p799 = pneg %p420
        $region158: #{tpu_custom_call.1} parent=91 // pred_check_branch
          %801 = sbr.rel (%p799) target = $region160
        $region159: #{tpu_custom_call.1} parent=91 // pred_region
          %802 = dma.done [#allocation29], 16
        $region160: #{tpu_custom_call.1} parent=91 // pred_fallthru
          _
        // Predicated region
        $region161: #{tpu_custom_call.1} parent=91 // pred_check
          %p803 = pneg %p441
        $region162: #{tpu_custom_call.1} parent=91 // pred_check_branch
          %805 = sbr.rel (%p803) target = $region164
        $region163: #{tpu_custom_call.1} parent=91 // pred_region
          %806 = dma.done [#allocation32], 16
        $region164: #{tpu_custom_call.1} parent=91 // pred_fallthru
          _
        %s807 = sand.u32 %s66, 1
        %s808 = scalar_lea.sflag [#allocation5], %s807
        %s809 = sand.u32 %s66, 1
        %s810 = smul.addr %s809, 16
        %s811 = scalar_lea.vmem [#allocation4], %s810
        %p812 = pneg %p79
        %p813 = pneg %p76
        %s814 = sand.u32 %s46, 1
        %s815 = scalar_lea.sflag [#allocation8], %s814
        %s816 = sand.u32 %s92, 1
        %s817 = smul.addr %s816, 16
        %s818 = scalar_lea.vmem [#allocation7], %s817
        %p819 = pneg %p105
        %p820 = pneg %p102
        %p821 = pneg %p126
        %p822 = pneg %p123
        %p823 = pneg %p147
        %p824 = pneg %p144
        %p825 = pneg %p168
        %p826 = pneg %p165
        %p827 = pneg %p189
        %p828 = pneg %p186
        %p829 = pneg %p210
        %p830 = pneg %p207
        %p831 = pneg %p231
        %p832 = pneg %p228
        %p833 = pneg %p252
        %p834 = pneg %p249
        %p835 = pneg %p273
        %p836 = pneg %p270
        %p837 = pneg %p294
        %p838 = pneg %p291
        %p839 = pneg %p315
        %p840 = pneg %p312
        %p841 = pneg %p336
        %p842 = pneg %p333
        %p843 = pneg %p357
        %p844 = pneg %p354
        %p845 = pneg %p378
        %p846 = pneg %p375
        %p847 = pneg %p399
        %p848 = pneg %p396
        %p849 = pneg %p420
        %p850 = pneg %p417
        %p851 = pneg %p441
        %p852 = pneg %p438
        %p853 = pneg %p469
        %p854 = pneg %p466
        %s855 = sand.u32 %s456, 1
        %s856 = scalar_lea.sflag [#allocation6], %s855
        %s857 = sand.u32 %s456, 1
        %s858 = smul.addr %s857, 8
        %s859 = scalar_lea.vmem [#allocation33], %s858
        %p861 = scmp.eq.s32.totalorder %s51, 0
        // Predicated region
        $region165: #{tpu_custom_call.1} parent=91 // pred_check
          %p862 = pneg %p861
        $region166: #{tpu_custom_call.1} parent=91 // pred_check_branch
          %864 = sbr.rel (%p862) target = $region168
        $region167: #{tpu_custom_call.1} parent=91 // pred_region
          %v865 = vld [vmem:[%s729] sm:$0xff]
          %v866 = vld [vmem:[%s729 + $0x8] sm:$0xff]
          %v867 = vld [vmem:[%s738] sm:$0xff]
          %v868 = vld [vmem:[%s738 + $0x8] sm:$0xff]
          %v869 = vadd.f32 %v865, %v867
          %v870 = vadd.f32 %v866, %v868
          %v871 = vpack.c.bf16 %v870, %v869
          %v872 = vld [vmem:[#allocation12] sm:$0xf]
          %v873 = vld [vmem:[#allocation12 + $0x4] sm:$0xf]
          %v874 = vld [vmem:[#allocation12 + $0x8] sm:$0xf]
          %v875 = vld [vmem:[#allocation12 + $0xc] sm:$0xf]
          %v876 = vld [vmem:[#allocation13] sm:$0x1]
          %v878 = vlaneseq
          %v879 = vshrl.u32 %v878, 7
          %v880 = vsub.s32 0, %v879
          %v881 = vrot.slane %v876, %v880
          %v887 = vunpack.c.l.b16 %v872
          %v888 = vunpack.c.l.b16 %v873
          %v889 = vunpack.c.l.b16 %v874
          %v890 = vunpack.c.l.b16 %v875
          %v891 = vpack.c.b16 %v888, %v887
          %v892 = vpack.c.b16 %v890, %v889
          %vm895 = vcmask 261120
          %v897 = vsel %vm895, %v871, 0
          %899 = vmatprep.subr.bf16.mxu0 0
          %900 = vmatpush1.bf16.msra.mxu0 %v891
          %901 = vmatprep.subr.bf16.mxu0 0
          %902 = vmatpush1.bf16.msra.mxu0 %v892
          %903 = vmatprep.subr.bf16.mxu0 0
          %904 = vmatpush1.bf16.msra.mxu0 0
          %905 = vmatprep.subr.bf16.mxu0 0
          %906 = vmatpush1.bf16.msra.mxu0 0
          %907 = vmatprep.subr.bf16.mxu0 0
          %908 = vmatpush1.bf16.msra.mxu0 0
          %909 = vmatprep.subr.bf16.mxu0 0
          %910 = vmatpush1.bf16.msra.mxu0 0
          %911 = vmatprep.subr.bf16.mxu0 0
          %912 = vmatpush1.bf16.msra.mxu0 0
          %913 = vmatprep.subr.bf16.mxu0 0
          %914 = vmatpush1.bf16.msra.mxu0 0
          %915 = vmatprep.subr.bf16.mxu0 0
          %916 = vmatpush1.bf16.msra.mxu0 0
          %917 = vmatprep.subr.bf16.mxu0 0
          %918 = vmatpush1.bf16.msra.mxu0 0
          %919 = vmatprep.subr.bf16.mxu0 0
          %920 = vmatpush1.bf16.msra.mxu0 0
          %921 = vmatprep.subr.bf16.mxu0 0
          %922 = vmatpush1.bf16.msra.mxu0 0
          %923 = vmatprep.subr.bf16.mxu0 0
          %924 = vmatpush1.bf16.msra.mxu0 0
          %925 = vmatprep.subr.bf16.mxu0 0
          %926 = vmatpush1.bf16.msra.mxu0 0
          %927 = vmatprep.subr.bf16.mxu0 0
          %928 = vmatpush1.bf16.msra.mxu0 0
          %929 = vmatprep.subr.bf16.mxu0 0
          %930 = vmatpush1.bf16.msra.mxu0 0
          %931 = vmatprep.mubr.bf16.mxu0 0
          %932 = vmatmul.mubr.bf16.gmra.mrb[0].mxu0 %v897
          %v933 = vpop.f32.mrb[0].mxu0
          %v934 = vadd.f32 %v881, %v933
          %v935 = vpop.f32.mrb[0].mxu0
          %v936 = vpop.f32.mrb[0].mxu0
          %v937 = vadd.f32 %v881, %v936
          %v938 = vpop.f32.mrb[0].mxu0
          %939 = vdwg.mxu0
          %v940 = vpack.c.bf16 %v866, %v865
          %v941 = vld [vmem:[#allocation15] sm:$0xf]
          %v942 = vld [vmem:[#allocation15 + $0x4] sm:$0xf]
          %v943 = vld [vmem:[#allocation15 + $0x8] sm:$0xf]
          %v944 = vld [vmem:[#allocation15 + $0xc] sm:$0xf]
          %v945 = vld [vmem:[#allocation16] sm:$0x1]
          %v947 = vlaneseq
          %v948 = vshrl.u32 %v947, 7
          %v949 = vsub.s32 0, %v948
          %v950 = vrot.slane %v945, %v949
          %v956 = vunpack.c.l.b16 %v941
          %v957 = vunpack.c.l.b16 %v942
          %v958 = vunpack.c.l.b16 %v943
          %v959 = vunpack.c.l.b16 %v944
          %v960 = vpack.c.b16 %v957, %v956
          %v961 = vpack.c.b16 %v959, %v958
          %v965 = vsel %vm895, %v940, 0
          %967 = vmatprep.subr.bf16.mxu0 0
          %968 = vmatpush1.bf16.msra.mxu0 %v960
          %969 = vmatprep.subr.bf16.mxu0 0
          %970 = vmatpush1.bf16.msra.mxu0 %v961
          %971 = vmatprep.subr.bf16.mxu0 0
          %972 = vmatpush1.bf16.msra.mxu0 0
          %973 = vmatprep.subr.bf16.mxu0 0
          %974 = vmatpush1.bf16.msra.mxu0 0
          %975 = vmatprep.subr.bf16.mxu0 0
          %976 = vmatpush1.bf16.msra.mxu0 0
          %977 = vmatprep.subr.bf16.mxu0 0
          %978 = vmatpush1.bf16.msra.mxu0 0
          %979 = vmatprep.subr.bf16.mxu0 0
          %980 = vmatpush1.bf16.msra.mxu0 0
          %981 = vmatprep.subr.bf16.mxu0 0
          %982 = vmatpush1.bf16.msra.mxu0 0
          %983 = vmatprep.subr.bf16.mxu0 0
          %984 = vmatpush1.bf16.msra.mxu0 0
          %985 = vmatprep.subr.bf16.mxu0 0
          %986 = vmatpush1.bf16.msra.mxu0 0
          %987 = vmatprep.subr.bf16.mxu0 0
          %988 = vmatpush1.bf16.msra.mxu0 0
          %989 = vmatprep.subr.bf16.mxu0 0
          %990 = vmatpush1.bf16.msra.mxu0 0
          %991 = vmatprep.subr.bf16.mxu0 0
          %992 = vmatpush1.bf16.msra.mxu0 0
          %993 = vmatprep.subr.bf16.mxu0 0
          %994 = vmatpush1.bf16.msra.mxu0 0
          %995 = vmatprep.subr.bf16.mxu0 0
          %996 = vmatpush1.bf16.msra.mxu0 0
          %997 = vmatprep.subr.bf16.mxu0 0
          %998 = vmatpush1.bf16.msra.mxu0 0
          %999 = vmatprep.mubr.bf16.mxu0 0
          %1000 = vmatmul.mubr.bf16.gmra.mrb[0].mxu0 %v965
          %v1001 = vpop.f32.mrb[0].mxu0
          %v1002 = vadd.f32 %v950, %v1001
          %v1003 = vpop.f32.mrb[0].mxu0
          %v1004 = vpop.f32.mrb[0].mxu0
          %v1005 = vadd.f32 %v950, %v1004
          %v1006 = vpop.f32.mrb[0].mxu0
          %1007 = vdwg.mxu0
          %v1008 = vpack.c.bf16 %v937, %v934
          %1009 = vst.msk [vmem:[#allocation2] sm:$0xff] %vm895, %v1008
          %v1010 = vpack.c.bf16 %v1005, %v1002
          %1011 = vst.msk [vmem:[#allocation3] sm:$0xff] %vm895, %v1010
        $region168: #{tpu_custom_call.1} parent=91 // pred_fallthru
          _
        %s1012 = smul.u32 %s51, 8
        %s1013 = scalar_lea.vmem %s729, %s1012 [#allocation4]
        %v1014 = vld [vmem:[%s1013] sm:$0xff]
        %s1015 = scalar_lea.vmem %s738, %s1012 [#allocation7]
        %v1016 = vld [vmem:[%s1015] sm:$0xff]
        %v1017 = vadd.f32 %v1014, %v1016
        %v1018 = vpack.c.bf16 %v1017, %v1017
        %v1019 = vld [vmem:[#allocation9] sm:$0xf]
        %v1020 = vld [vmem:[#allocation9 + $0x4] sm:$0xf]
        %v1021 = vld [vmem:[#allocation9 + $0x8] sm:$0xf]
        %v1022 = vld [vmem:[#allocation9 + $0xc] sm:$0xf]
        %v1023 = vld [vmem:[#allocation10] sm:$0x1]
        %v1025 = vlaneseq
        %v1026 = vshrl.u32 %v1025, 7
        %v1027 = vsub.s32 0, %v1026
        %v1028 = vrot.slane %v1023, %v1027
        %v1034 = vunpack.c.l.b16 %v1019
        %v1035 = vunpack.c.l.b16 %v1020
        %v1036 = vunpack.c.l.b16 %v1021
        %v1037 = vunpack.c.l.b16 %v1022
        %v1038 = vpack.c.b16 %v1035, %v1034
        %v1039 = vpack.c.b16 %v1037, %v1036
        %vm1042 = vcmask 261120
        %v1044 = vsel %vm1042, %v1018, 0
        %1046 = vmatprep.subr.bf16.mxu0 0
        %1047 = vmatpush1.bf16.msra.mxu0 %v1038
        %1048 = vmatprep.subr.bf16.mxu0 0
        %1049 = vmatpush1.bf16.msra.mxu0 %v1039
        %1050 = vmatprep.subr.bf16.mxu0 0
        %1051 = vmatpush1.bf16.msra.mxu0 0
        %1052 = vmatprep.subr.bf16.mxu0 0
        %1053 = vmatpush1.bf16.msra.mxu0 0
        %1054 = vmatprep.subr.bf16.mxu0 0
        %1055 = vmatpush1.bf16.msra.mxu0 0
        %1056 = vmatprep.subr.bf16.mxu0 0
        %1057 = vmatpush1.bf16.msra.mxu0 0
        %1058 = vmatprep.subr.bf16.mxu0 0
        %1059 = vmatpush1.bf16.msra.mxu0 0
        %1060 = vmatprep.subr.bf16.mxu0 0
        %1061 = vmatpush1.bf16.msra.mxu0 0
        %1062 = vmatprep.subr.bf16.mxu0 0
        %1063 = vmatpush1.bf16.msra.mxu0 0
        %1064 = vmatprep.subr.bf16.mxu0 0
        %1065 = vmatpush1.bf16.msra.mxu0 0
        %1066 = vmatprep.subr.bf16.mxu0 0
        %1067 = vmatpush1.bf16.msra.mxu0 0
        %1068 = vmatprep.subr.bf16.mxu0 0
        %1069 = vmatpush1.bf16.msra.mxu0 0
        %1070 = vmatprep.subr.bf16.mxu0 0
        %1071 = vmatpush1.bf16.msra.mxu0 0
        %1072 = vmatprep.subr.bf16.mxu0 0
        %1073 = vmatpush1.bf16.msra.mxu0 0
        %1074 = vmatprep.subr.bf16.mxu0 0
        %1075 = vmatpush1.bf16.msra.mxu0 0
        %1076 = vmatprep.subr.bf16.mxu0 0
        %1077 = vmatpush1.bf16.msra.mxu0 0
        %1078 = vmatprep.mubr.bf16.mxu0 0
        %1079 = vmatmul.mubr.bf16.gmra.mrb[0].mxu0 %v1044
        %v1080 = vpop.f32.mrb[0].mxu0
        %v1081 = vadd.f32 %v1028, %v1080
        %v1082 = vpop.f32.mrb[0].mxu0
        %v1083 = vpop.f32.mrb[0].mxu0
        %v1084 = vpop.f32.mrb[0].mxu0
        %1085 = vdwg.mxu0
        %v1086 = vpack.c.bf16 %v1081, %v1081
        %v1087 = vld [vmem:[#allocation2] sm:$0xff]
        %v1088 = vld [vmem:[#allocation3] sm:$0xff]
        %v1089 = vld [vmem:[#allocation19] sm:$0x1]
        %v1091 = vlaneseq
        %v1092 = vshrl.u32 %v1091, 7
        %v1093 = vsub.s32 0, %v1092
        %v1094 = vrot.slane %v1089, %v1093
        %v1096 = vadd.f32 %v1094, 0.0
        %vm1097 = vcmask 64512
        %v1099 = vsel %vm1097, %v1086, 0
        %v1102 = vsel %vm1097, %v1087, 0
        %1104 = vmatprep.subr.bf16.mxu0 0
        %1105 = vmatpush1.bf16.xpose.msra.mxu0 %v1102
        %1106 = vmatprep.subr.bf16.mxu0 0
        %1107 = vmatpush1.bf16.xpose.msra.mxu0 0
        %1108 = vmatprep.subr.bf16.mxu0 0
        %1109 = vmatpush1.bf16.xpose.msra.mxu0 0
        %1110 = vmatprep.subr.bf16.mxu0 0
        %1111 = vmatpush1.bf16.xpose.msra.mxu0 0
        %1112 = vmatprep.subr.bf16.mxu0 0
        %1113 = vmatpush1.bf16.xpose.msra.mxu0 0
        %1114 = vmatprep.subr.bf16.mxu0 0
        %1115 = vmatpush1.bf16.xpose.msra.mxu0 0
        %1116 = vmatprep.subr.bf16.mxu0 0
        %1117 = vmatpush1.bf16.xpose.msra.mxu0 0
        %1118 = vmatprep.subr.bf16.mxu0 0
        %1119 = vmatpush1.bf16.xpose.msra.mxu0 0
        %1120 = vmatprep.subr.bf16.mxu0 0
        %1121 = vmatpush1.bf16.xpose.msra.mxu0 0
        %1122 = vmatprep.subr.bf16.mxu0 0
        %1123 = vmatpush1.bf16.xpose.msra.mxu0 0
        %1124 = vmatprep.subr.bf16.mxu0 0
        %1125 = vmatpush1.bf16.xpose.msra.mxu0 0
        %1126 = vmatprep.subr.bf16.mxu0 0
        %1127 = vmatpush1.bf16.xpose.msra.mxu0 0
        %1128 = vmatprep.subr.bf16.mxu0 0
        %1129 = vmatpush1.bf16.xpose.msra.mxu0 0
        %1130 = vmatprep.subr.bf16.mxu0 0
        %1131 = vmatpush1.bf16.xpose.msra.mxu0 0
        %1132 = vmatprep.subr.bf16.mxu0 0
        %1133 = vmatpush1.bf16.xpose.msra.mxu0 0
        %1134 = vmatprep.subr.bf16.mxu0 0
        %1135 = vmatpush1.bf16.xpose.msra.mxu0 0
        %1136 = vmatprep.mubr.bf16.mxu0 0
        %1137 = vmatmul.mubr.bf16.gmra.mrb[0].mxu0 %v1099
        %v1138 = vpop.f32.mrb[0].mxu0
        %v1139 = vadd.f32 0.0, %v1138
        %v1140 = vpop.f32.mrb[0].mxu0
        %v1141 = vpop.f32.mrb[0].mxu0
        %v1142 = vpop.f32.mrb[0].mxu0
        %1143 = vdwg.mxu0
        %vm1144 = vcmask 130048
        %v1145 = vsel %vm1144, %v1139, -inf
        %1146 = vmax.xlane.f32.xlu0 %v1145
        %v1147 = vpop.xlane.xlu0 %1146
        %v1148 = vsub.f32 %v1139, %v1147
        %v1149 = vmul.f32 %v1148, 1.442695
        %v1150 = vpow.pop %v1149
        %v1151 = vsel %vm1144, %v1150, 0.0
        %1152 = vadd.xlane.f32.xlu0 %v1151
        %v1153 = vpop.xlane.xlu0 %1152
        %v1154 = vrcp.pop %v1153
        %v1155 = vmul.f32 %v1150, %v1154
        %v1156 = vpack.c.bf16 %v1155, %v1155
        %v1158 = vsel %vm1144, %v1156, 0
        %1160 = vmatprep.subr.bf16.mxu0 0
        %1161 = vmatpush1.bf16.msra.mxu0 %v1088
        %1162 = vmatprep.subr.bf16.mxu0 0
        %1163 = vmatpush1.bf16.msra.mxu0 0
        %1164 = vmatprep.subr.bf16.mxu0 0
        %1165 = vmatpush1.bf16.msra.mxu0 0
        %1166 = vmatprep.subr.bf16.mxu0 0
        %1167 = vmatpush1.bf16.msra.mxu0 0
        %1168 = vmatprep.subr.bf16.mxu0 0
        %1169 = vmatpush1.bf16.msra.mxu0 0
        %1170 = vmatprep.subr.bf16.mxu0 0
        %1171 = vmatpush1.bf16.msra.mxu0 0
        %1172 = vmatprep.subr.bf16.mxu0 0
        %1173 = vmatpush1.bf16.msra.mxu0 0
        %1174 = vmatprep.subr.bf16.mxu0 0
        %1175 = vmatpush1.bf16.msra.mxu0 0
        %1176 = vmatprep.subr.bf16.mxu0 0
        %1177 = vmatpush1.bf16.msra.mxu0 0
        %1178 = vmatprep.subr.bf16.mxu0 0
        %1179 = vmatpush1.bf16.msra.mxu0 0
        %1180 = vmatprep.subr.bf16.mxu0 0
        %1181 = vmatpush1.bf16.msra.mxu0 0
        %1182 = vmatprep.subr.bf16.mxu0 0
        %1183 = vmatpush1.bf16.msra.mxu0 0
        %1184 = vmatprep.subr.bf16.mxu0 0
        %1185 = vmatpush1.bf16.msra.mxu0 0
        %1186 = vmatprep.subr.bf16.mxu0 0
        %1187 = vmatpush1.bf16.msra.mxu0 0
        %1188 = vmatprep.subr.bf16.mxu0 0
        %1189 = vmatpush1.bf16.msra.mxu0 0
        %1190 = vmatprep.subr.bf16.mxu0 0
        %1191 = vmatpush1.bf16.msra.mxu0 0
        %1192 = vmatprep.mubr.bf16.mxu0 0
        %1193 = vmatmul.mubr.bf16.gmra.mrb[0].mxu0 %v1158
        %v1194 = vpop.f32.mrb[0].mxu0
        %v1195 = vadd.f32 0.0, %v1194
        %v1196 = vpop.f32.mrb[0].mxu0
        %v1197 = vpop.f32.mrb[0].mxu0
        %v1198 = vpop.f32.mrb[0].mxu0
        %1199 = vdwg.mxu0
        %v1200 = vpack.c.bf16 %v1195, %v1195
        %v1201 = vld [vmem:[#allocation18] sm:$0xf]
        %v1203 = vsel %vm1097, %v1200, 0
        %vm1205 = vcmask 1043456
        %v1207 = vsel %vm1205, %v1201, 0
        %1209 = vmatprep.subr.bf16.mxu0 0
        %1210 = vmatpush1.bf16.msra.mxu0 %v1207
        %1211 = vmatprep.subr.bf16.mxu0 0
        %1212 = vmatpush1.bf16.msra.mxu0 0
        %1213 = vmatprep.subr.bf16.mxu0 0
        %1214 = vmatpush1.bf16.msra.mxu0 0
        %1215 = vmatprep.subr.bf16.mxu0 0
        %1216 = vmatpush1.bf16.msra.mxu0 0
        %1217 = vmatprep.subr.bf16.mxu0 0
        %1218 = vmatpush1.bf16.msra.mxu0 0
        %1219 = vmatprep.subr.bf16.mxu0 0
        %1220 = vmatpush1.bf16.msra.mxu0 0
        %1221 = vmatprep.subr.bf16.mxu0 0
        %1222 = vmatpush1.bf16.msra.mxu0 0
        %1223 = vmatprep.subr.bf16.mxu0 0
        %1224 = vmatpush1.bf16.msra.mxu0 0
        %1225 = vmatprep.subr.bf16.mxu0 0
        %1226 = vmatpush1.bf16.msra.mxu0 0
        %1227 = vmatprep.subr.bf16.mxu0 0
        %1228 = vmatpush1.bf16.msra.mxu0 0
        %1229 = vmatprep.subr.bf16.mxu0 0
        %1230 = vmatpush1.bf16.msra.mxu0 0
        %1231 = vmatprep.subr.bf16.mxu0 0
        %1232 = vmatpush1.bf16.msra.mxu0 0
        %1233 = vmatprep.subr.bf16.mxu0 0
        %1234 = vmatpush1.bf16.msra.mxu0 0
        %1235 = vmatprep.subr.bf16.mxu0 0
        %1236 = vmatpush1.bf16.msra.mxu0 0
        %1237 = vmatprep.subr.bf16.mxu0 0
        %1238 = vmatpush1.bf16.msra.mxu0 0
        %1239 = vmatprep.subr.bf16.mxu0 0
        %1240 = vmatpush1.bf16.msra.mxu0 0
        %1241 = vmatprep.mubr.bf16.mxu0 0
        %1242 = vmatmul.mubr.bf16.gmra.mrb[0].mxu0 %v1203
        %v1243 = vpop.f32.mrb[0].mxu0
        %v1244 = vadd.f32 0.0, %v1243
        %v1245 = vpop.f32.mrb[0].mxu0
        %v1246 = vpop.f32.mrb[0].mxu0
        %v1247 = vpop.f32.mrb[0].mxu0
        %1248 = vdwg.mxu0
        %v1249 = vadd.f32 %v1096, %v1244
        %1251 = vrot.lane.b32.xlu0 %v1086, 120
        %v1252 = vpop.permute.xlu0 %1251
        %1254 = vrot.lane.b32.xlu0 %v1087, 120
        %v1255 = vpop.permute.xlu0 %1254
        %v1257 = vsel %vm1097, %v1252, 0
        %v1260 = vsel %vm1097, %v1255, 0
        %1262 = vmatprep.subr.bf16.mxu0 0
        %1263 = vmatpush1.bf16.xpose.msra.mxu0 %v1260
        %1264 = vmatprep.subr.bf16.mxu0 0
        %1265 = vmatpush1.bf16.xpose.msra.mxu0 0
        %1266 = vmatprep.subr.bf16.mxu0 0
        %1267 = vmatpush1.bf16.xpose.msra.mxu0 0
        %1268 = vmatprep.subr.bf16.mxu0 0
        %1269 = vmatpush1.bf16.xpose.msra.mxu0 0
        %1270 = vmatprep.subr.bf16.mxu0 0
        %1271 = vmatpush1.bf16.xpose.msra.mxu0 0
        %1272 = vmatprep.subr.bf16.mxu0 0
        %1273 = vmatpush1.bf16.xpose.msra.mxu0 0
        %1274 = vmatprep.subr.bf16.mxu0 0
        %1275 = vmatpush1.bf16.xpose.msra.mxu0 0
        %1276 = vmatprep.subr.bf16.mxu0 0
        %1277 = vmatpush1.bf16.xpose.msra.mxu0 0
        %1278 = vmatprep.subr.bf16.mxu0 0
        %1279 = vmatpush1.bf16.xpose.msra.mxu0 0
        %1280 = vmatprep.subr.bf16.mxu0 0
        %1281 = vmatpush1.bf16.xpose.msra.mxu0 0
        %1282 = vmatprep.subr.bf16.mxu0 0
        %1283 = vmatpush1.bf16.xpose.msra.mxu0 0
        %1284 = vmatprep.subr.bf16.mxu0 0
        %1285 = vmatpush1.bf16.xpose.msra.mxu0 0
        %1286 = vmatprep.subr.bf16.mxu0 0
        %1287 = vmatpush1.bf16.xpose.msra.mxu0 0
        %1288 = vmatprep.subr.bf16.mxu0 0
        %1289 = vmatpush1.bf16.xpose.msra.mxu0 0
        %1290 = vmatprep.subr.bf16.mxu0 0
        %1291 = vmatpush1.bf16.xpose.msra.mxu0 0
        %1292 = vmatprep.subr.bf16.mxu0 0
        %1293 = vmatpush1.bf16.xpose.msra.mxu0 0
        %1294 = vmatprep.mubr.bf16.mxu0 0
        %1295 = vmatmul.mubr.bf16.gmra.mrb[0].mxu0 %v1257
        %v1296 = vpop.f32.mrb[0].mxu0
        %v1297 = vadd.f32 0.0, %v1296
        %v1298 = vpop.f32.mrb[0].mxu0
        %v1299 = vpop.f32.mrb[0].mxu0
        %v1300 = vpop.f32.mrb[0].mxu0
        %1301 = vdwg.mxu0
        %v1302 = vsel %vm1144, %v1297, -inf
        %1303 = vmax.xlane.f32.xlu0 %v1302
        %v1304 = vpop.xlane.xlu0 %1303
        %v1305 = vsub.f32 %v1297, %v1304
        %v1306 = vmul.f32 %v1305, 1.442695
        %v1307 = vpow.pop %v1306
        %v1308 = vsel %vm1144, %v1307, 0.0
        %1309 = vadd.xlane.f32.xlu0 %v1308
        %v1310 = vpop.xlane.xlu0 %1309
        %v1311 = vrcp.pop %v1310
        %v1312 = vmul.f32 %v1307, %v1311
        %v1313 = vpack.c.bf16 %v1312, %v1312
        %1315 = vrot.lane.b32.xlu0 %v1088, 120
        %v1316 = vpop.permute.xlu0 %1315
        %v1319 = vsel %vm1144, %v1313, 0
        %1321 = vmatprep.subr.bf16.mxu0 0
        %1322 = vmatpush1.bf16.msra.mxu0 %v1316
        %1323 = vmatprep.subr.bf16.mxu0 0
        %1324 = vmatpush1.bf16.msra.mxu0 0
        %1325 = vmatprep.subr.bf16.mxu0 0
        %1326 = vmatpush1.bf16.msra.mxu0 0
        %1327 = vmatprep.subr.bf16.mxu0 0
        %1328 = vmatpush1.bf16.msra.mxu0 0
        %1329 = vmatprep.subr.bf16.mxu0 0
        %1330 = vmatpush1.bf16.msra.mxu0 0
        %1331 = vmatprep.subr.bf16.mxu0 0
        %1332 = vmatpush1.bf16.msra.mxu0 0
        %1333 = vmatprep.subr.bf16.mxu0 0
        %1334 = vmatpush1.bf16.msra.mxu0 0
        %1335 = vmatprep.subr.bf16.mxu0 0
        %1336 = vmatpush1.bf16.msra.mxu0 0
        %1337 = vmatprep.subr.bf16.mxu0 0
        %1338 = vmatpush1.bf16.msra.mxu0 0
        %1339 = vmatprep.subr.bf16.mxu0 0
        %1340 = vmatpush1.bf16.msra.mxu0 0
        %1341 = vmatprep.subr.bf16.mxu0 0
        %1342 = vmatpush1.bf16.msra.mxu0 0
        %1343 = vmatprep.subr.bf16.mxu0 0
        %1344 = vmatpush1.bf16.msra.mxu0 0
        %1345 = vmatprep.subr.bf16.mxu0 0
        %1346 = vmatpush1.bf16.msra.mxu0 0
        %1347 = vmatprep.subr.bf16.mxu0 0
        %1348 = vmatpush1.bf16.msra.mxu0 0
        %1349 = vmatprep.subr.bf16.mxu0 0
        %1350 = vmatpush1.bf16.msra.mxu0 0
        %1351 = vmatprep.subr.bf16.mxu0 0
        %1352 = vmatpush1.bf16.msra.mxu0 0
        %1353 = vmatprep.mubr.bf16.mxu0 0
        %1354 = vmatmul.mubr.bf16.gmra.mrb[0].mxu0 %v1319
        %v1355 = vpop.f32.mrb[0].mxu0
        %v1356 = vadd.f32 0.0, %v1355
        %v1357 = vpop.f32.mrb[0].mxu0
        %v1358 = vpop.f32.mrb[0].mxu0
        %v1359 = vpop.f32.mrb[0].mxu0
        %1360 = vdwg.mxu0
        %v1361 = vpack.c.bf16 %v1356, %v1356
        %v1362 = vld [vmem:[#allocation18 + $0x4] sm:$0xf]
        %v1364 = vsel %vm1097, %v1361, 0
        %v1367 = vsel %vm1205, %v1362, 0
        %1369 = vmatprep.subr.bf16.mxu0 0
        %1370 = vmatpush1.bf16.msra.mxu0 %v1367
        %1371 = vmatprep.subr.bf16.mxu0 0
        %1372 = vmatpush1.bf16.msra.mxu0 0
        %1373 = vmatprep.subr.bf16.mxu0 0
        %1374 = vmatpush1.bf16.msra.mxu0 0
        %1375 = vmatprep.subr.bf16.mxu0 0
        %1376 = vmatpush1.bf16.msra.mxu0 0
        %1377 = vmatprep.subr.bf16.mxu0 0
        %1378 = vmatpush1.bf16.msra.mxu0 0
        %1379 = vmatprep.subr.bf16.mxu0 0
        %1380 = vmatpush1.bf16.msra.mxu0 0
        %1381 = vmatprep.subr.bf16.mxu0 0
        %1382 = vmatpush1.bf16.msra.mxu0 0
        %1383 = vmatprep.subr.bf16.mxu0 0
        %1384 = vmatpush1.bf16.msra.mxu0 0
        %1385 = vmatprep.subr.bf16.mxu0 0
        %1386 = vmatpush1.bf16.msra.mxu0 0
        %1387 = vmatprep.subr.bf16.mxu0 0
        %1388 = vmatpush1.bf16.msra.mxu0 0
        %1389 = vmatprep.subr.bf16.mxu0 0
        %1390 = vmatpush1.bf16.msra.mxu0 0
        %1391 = vmatprep.subr.bf16.mxu0 0
        %1392 = vmatpush1.bf16.msra.mxu0 0
        %1393 = vmatprep.subr.bf16.mxu0 0
        %1394 = vmatpush1.bf16.msra.mxu0 0
        %1395 = vmatprep.subr.bf16.mxu0 0
        %1396 = vmatpush1.bf16.msra.mxu0 0
        %1397 = vmatprep.subr.bf16.mxu0 0
        %1398 = vmatpush1.bf16.msra.mxu0 0
        %1399 = vmatprep.subr.bf16.mxu0 0
        %1400 = vmatpush1.bf16.msra.mxu0 0
        %1401 = vmatprep.mubr.bf16.mxu0 0
        %1402 = vmatmul.mubr.bf16.gmra.mrb[0].mxu0 %v1364
        %v1403 = vpop.f32.mrb[0].mxu0
        %v1404 = vadd.f32 0.0, %v1403
        %v1405 = vpop.f32.mrb[0].mxu0
        %v1406 = vpop.f32.mrb[0].mxu0
        %v1407 = vpop.f32.mrb[0].mxu0
        %1408 = vdwg.mxu0
        %v1409 = vadd.f32 %v1249, %v1404
        %1410 = vrot.lane.b32.xlu0 %v1086, 112
        %v1411 = vpop.permute.xlu0 %1410
        %1412 = vrot.lane.b32.xlu0 %v1087, 112
        %v1413 = vpop.permute.xlu0 %1412
        %v1415 = vsel %vm1097, %v1411, 0
        %v1418 = vsel %vm1097, %v1413, 0
        %1420 = vmatprep.subr.bf16.mxu0 0
        %1421 = vmatpush1.bf16.xpose.msra.mxu0 %v1418
        %1422 = vmatprep.subr.bf16.mxu0 0
        %1423 = vmatpush1.bf16.xpose.msra.mxu0 0
        %1424 = vmatprep.subr.bf16.mxu0 0
        %1425 = vmatpush1.bf16.xpose.msra.mxu0 0
        %1426 = vmatprep.subr.bf16.mxu0 0
        %1427 = vmatpush1.bf16.xpose.msra.mxu0 0
        %1428 = vmatprep.subr.bf16.mxu0 0
        %1429 = vmatpush1.bf16.xpose.msra.mxu0 0
        %1430 = vmatprep.subr.bf16.mxu0 0
        %1431 = vmatpush1.bf16.xpose.msra.mxu0 0
        %1432 = vmatprep.subr.bf16.mxu0 0
        %1433 = vmatpush1.bf16.xpose.msra.mxu0 0
        %1434 = vmatprep.subr.bf16.mxu0 0
        %1435 = vmatpush1.bf16.xpose.msra.mxu0 0
        %1436 = vmatprep.subr.bf16.mxu0 0
        %1437 = vmatpush1.bf16.xpose.msra.mxu0 0
        %1438 = vmatprep.subr.bf16.mxu0 0
        %1439 = vmatpush1.bf16.xpose.msra.mxu0 0
        %1440 = vmatprep.subr.bf16.mxu0 0
        %1441 = vmatpush1.bf16.xpose.msra.mxu0 0
        %1442 = vmatprep.subr.bf16.mxu0 0
        %1443 = vmatpush1.bf16.xpose.msra.mxu0 0
        %1444 = vmatprep.subr.bf16.mxu0 0
        %1445 = vmatpush1.bf16.xpose.msra.mxu0 0
        %1446 = vmatprep.subr.bf16.mxu0 0
        %1447 = vmatpush1.bf16.xpose.msra.mxu0 0
        %1448 = vmatprep.subr.bf16.mxu0 0
        %1449 = vmatpush1.bf16.xpose.msra.mxu0 0
        %1450 = vmatprep.subr.bf16.mxu0 0
        %1451 = vmatpush1.bf16.xpose.msra.mxu0 0
        %1452 = vmatprep.mubr.bf16.mxu0 0
        %1453 = vmatmul.mubr.bf16.gmra.mrb[0].mxu0 %v1415
        %v1454 = vpop.f32.mrb[0].mxu0
        %v1455 = vadd.f32 0.0, %v1454
        %v1456 = vpop.f32.mrb[0].mxu0
        %v1457 = vpop.f32.mrb[0].mxu0
        %v1458 = vpop.f32.mrb[0].mxu0
        %1459 = vdwg.mxu0
        %v1460 = vsel %vm1144, %v1455, -inf
        %1461 = vmax.xlane.f32.xlu0 %v1460
        %v1462 = vpop.xlane.xlu0 %1461
        %v1463 = vsub.f32 %v1455, %v1462
        %v1464 = vmul.f32 %v1463, 1.442695
        %v1465 = vpow.pop %v1464
        %v1466 = vsel %vm1144, %v1465, 0.0
        %1467 = vadd.xlane.f32.xlu0 %v1466
        %v1468 = vpop.xlane.xlu0 %1467
        %v1469 = vrcp.pop %v1468
        %v1470 = vmul.f32 %v1465, %v1469
        %v1471 = vpack.c.bf16 %v1470, %v1470
        %1472 = vrot.lane.b32.xlu0 %v1088, 112
        %v1473 = vpop.permute.xlu0 %1472
        %v1476 = vsel %vm1144, %v1471, 0
        %1478 = vmatprep.subr.bf16.mxu0 0
        %1479 = vmatpush1.bf16.msra.mxu0 %v1473
        %1480 = vmatprep.subr.bf16.mxu0 0
        %1481 = vmatpush1.bf16.msra.mxu0 0
        %1482 = vmatprep.subr.bf16.mxu0 0
        %1483 = vmatpush1.bf16.msra.mxu0 0
        %1484 = vmatprep.subr.bf16.mxu0 0
        %1485 = vmatpush1.bf16.msra.mxu0 0
        %1486 = vmatprep.subr.bf16.mxu0 0
        %1487 = vmatpush1.bf16.msra.mxu0 0
        %1488 = vmatprep.subr.bf16.mxu0 0
        %1489 = vmatpush1.bf16.msra.mxu0 0
        %1490 = vmatprep.subr.bf16.mxu0 0
        %1491 = vmatpush1.bf16.msra.mxu0 0
        %1492 = vmatprep.subr.bf16.mxu0 0
        %1493 = vmatpush1.bf16.msra.mxu0 0
        %1494 = vmatprep.subr.bf16.mxu0 0
        %1495 = vmatpush1.bf16.msra.mxu0 0
        %1496 = vmatprep.subr.bf16.mxu0 0
        %1497 = vmatpush1.bf16.msra.mxu0 0
        %1498 = vmatprep.subr.bf16.mxu0 0
        %1499 = vmatpush1.bf16.msra.mxu0 0
        %1500 = vmatprep.subr.bf16.mxu0 0
        %1501 = vmatpush1.bf16.msra.mxu0 0
        %1502 = vmatprep.subr.bf16.mxu0 0
        %1503 = vmatpush1.bf16.msra.mxu0 0
        %1504 = vmatprep.subr.bf16.mxu0 0
        %1505 = vmatpush1.bf16.msra.mxu0 0
        %1506 = vmatprep.subr.bf16.mxu0 0
        %1507 = vmatpush1.bf16.msra.mxu0 0
        %1508 = vmatprep.subr.bf16.mxu0 0
        %1509 = vmatpush1.bf16.msra.mxu0 0
        %1510 = vmatprep.mubr.bf16.mxu0 0
        %1511 = vmatmul.mubr.bf16.gmra.mrb[0].mxu0 %v1476
        %v1512 = vpop.f32.mrb[0].mxu0
        %v1513 = vadd.f32 0.0, %v1512
        %v1514 = vpop.f32.mrb[0].mxu0
        %v1515 = vpop.f32.mrb[0].mxu0
        %v1516 = vpop.f32.mrb[0].mxu0
        %1517 = vdwg.mxu0
        %v1518 = vpack.c.bf16 %v1513, %v1513
        %v1519 = vld [vmem:[#allocation18 + $0x8] sm:$0xf]
        %v1521 = vsel %vm1097, %v1518, 0
        %v1524 = vsel %vm1205, %v1519, 0
        %1526 = vmatprep.subr.bf16.mxu0 0
        %1527 = vmatpush1.bf16.msra.mxu0 %v1524
        %1528 = vmatprep.subr.bf16.mxu0 0
        %1529 = vmatpush1.bf16.msra.mxu0 0
        %1530 = vmatprep.subr.bf16.mxu0 0
        %1531 = vmatpush1.bf16.msra.mxu0 0
        %1532 = vmatprep.subr.bf16.mxu0 0
        %1533 = vmatpush1.bf16.msra.mxu0 0
        %1534 = vmatprep.subr.bf16.mxu0 0
        %1535 = vmatpush1.bf16.msra.mxu0 0
        %1536 = vmatprep.subr.bf16.mxu0 0
        %1537 = vmatpush1.bf16.msra.mxu0 0
        %1538 = vmatprep.subr.bf16.mxu0 0
        %1539 = vmatpush1.bf16.msra.mxu0 0
        %1540 = vmatprep.subr.bf16.mxu0 0
        %1541 = vmatpush1.bf16.msra.mxu0 0
        %1542 = vmatprep.subr.bf16.mxu0 0
        %1543 = vmatpush1.bf16.msra.mxu0 0
        %1544 = vmatprep.subr.bf16.mxu0 0
        %1545 = vmatpush1.bf16.msra.mxu0 0
        %1546 = vmatprep.subr.bf16.mxu0 0
        %1547 = vmatpush1.bf16.msra.mxu0 0
        %1548 = vmatprep.subr.bf16.mxu0 0
        %1549 = vmatpush1.bf16.msra.mxu0 0
        %1550 = vmatprep.subr.bf16.mxu0 0
        %1551 = vmatpush1.bf16.msra.mxu0 0
        %1552 = vmatprep.subr.bf16.mxu0 0
        %1553 = vmatpush1.bf16.msra.mxu0 0
        %1554 = vmatprep.subr.bf16.mxu0 0
        %1555 = vmatpush1.bf16.msra.mxu0 0
        %1556 = vmatprep.subr.bf16.mxu0 0
        %1557 = vmatpush1.bf16.msra.mxu0 0
        %1558 = vmatprep.mubr.bf16.mxu0 0
        %1559 = vmatmul.mubr.bf16.gmra.mrb[0].mxu0 %v1521
        %v1560 = vpop.f32.mrb[0].mxu0
        %v1561 = vadd.f32 0.0, %v1560
        %v1562 = vpop.f32.mrb[0].mxu0
        %v1563 = vpop.f32.mrb[0].mxu0
        %v1564 = vpop.f32.mrb[0].mxu0
        %1565 = vdwg.mxu0
        %v1566 = vadd.f32 %v1409, %v1561
        %1567 = vrot.lane.b32.xlu0 %v1086, 104
        %v1568 = vpop.permute.xlu0 %1567
        %1569 = vrot.lane.b32.xlu0 %v1087, 104
        %v1570 = vpop.permute.xlu0 %1569
        %v1572 = vsel %vm1097, %v1568, 0
        %v1575 = vsel %vm1097, %v1570, 0
        %1577 = vmatprep.subr.bf16.mxu0 0
        %1578 = vmatpush1.bf16.xpose.msra.mxu0 %v1575
        %1579 = vmatprep.subr.bf16.mxu0 0
        %1580 = vmatpush1.bf16.xpose.msra.mxu0 0
        %1581 = vmatprep.subr.bf16.mxu0 0
        %1582 = vmatpush1.bf16.xpose.msra.mxu0 0
        %1583 = vmatprep.subr.bf16.mxu0 0
        %1584 = vmatpush1.bf16.xpose.msra.mxu0 0
        %1585 = vmatprep.subr.bf16.mxu0 0
        %1586 = vmatpush1.bf16.xpose.msra.mxu0 0
        %1587 = vmatprep.subr.bf16.mxu0 0
        %1588 = vmatpush1.bf16.xpose.msra.mxu0 0
        %1589 = vmatprep.subr.bf16.mxu0 0
        %1590 = vmatpush1.bf16.xpose.msra.mxu0 0
        %1591 = vmatprep.subr.bf16.mxu0 0
        %1592 = vmatpush1.bf16.xpose.msra.mxu0 0
        %1593 = vmatprep.subr.bf16.mxu0 0
        %1594 = vmatpush1.bf16.xpose.msra.mxu0 0
        %1595 = vmatprep.subr.bf16.mxu0 0
        %1596 = vmatpush1.bf16.xpose.msra.mxu0 0
        %1597 = vmatprep.subr.bf16.mxu0 0
        %1598 = vmatpush1.bf16.xpose.msra.mxu0 0
        %1599 = vmatprep.subr.bf16.mxu0 0
        %1600 = vmatpush1.bf16.xpose.msra.mxu0 0
        %1601 = vmatprep.subr.bf16.mxu0 0
        %1602 = vmatpush1.bf16.xpose.msra.mxu0 0
        %1603 = vmatprep.subr.bf16.mxu0 0
        %1604 = vmatpush1.bf16.xpose.msra.mxu0 0
        %1605 = vmatprep.subr.bf16.mxu0 0
        %1606 = vmatpush1.bf16.xpose.msra.mxu0 0
        %1607 = vmatprep.subr.bf16.mxu0 0
        %1608 = vmatpush1.bf16.xpose.msra.mxu0 0
        %1609 = vmatprep.mubr.bf16.mxu0 0
        %1610 = vmatmul.mubr.bf16.gmra.mrb[0].mxu0 %v1572
        %v1611 = vpop.f32.mrb[0].mxu0
        %v1612 = vadd.f32 0.0, %v1611
        %v1613 = vpop.f32.mrb[0].mxu0
        %v1614 = vpop.f32.mrb[0].mxu0
        %v1615 = vpop.f32.mrb[0].mxu0
        %1616 = vdwg.mxu0
        %v1617 = vsel %vm1144, %v1612, -inf
        %1618 = vmax.xlane.f32.xlu0 %v1617
        %v1619 = vpop.xlane.xlu0 %1618
        %v1620 = vsub.f32 %v1612, %v1619
        %v1621 = vmul.f32 %v1620, 1.442695
        %v1622 = vpow.pop %v1621
        %v1623 = vsel %vm1144, %v1622, 0.0
        %1624 = vadd.xlane.f32.xlu0 %v1623
        %v1625 = vpop.xlane.xlu0 %1624
        %v1626 = vrcp.pop %v1625
        %v1627 = vmul.f32 %v1622, %v1626
        %v1628 = vpack.c.bf16 %v1627, %v1627
        %1629 = vrot.lane.b32.xlu0 %v1088, 104
        %v1630 = vpop.permute.xlu0 %1629
        %v1633 = vsel %vm1144, %v1628, 0
        %1635 = vmatprep.subr.bf16.mxu0 0
        %1636 = vmatpush1.bf16.msra.mxu0 %v1630
        %1637 = vmatprep.subr.bf16.mxu0 0
        %1638 = vmatpush1.bf16.msra.mxu0 0
        %1639 = vmatprep.subr.bf16.mxu0 0
        %1640 = vmatpush1.bf16.msra.mxu0 0
        %1641 = vmatprep.subr.bf16.mxu0 0
        %1642 = vmatpush1.bf16.msra.mxu0 0
        %1643 = vmatprep.subr.bf16.mxu0 0
        %1644 = vmatpush1.bf16.msra.mxu0 0
        %1645 = vmatprep.subr.bf16.mxu0 0
        %1646 = vmatpush1.bf16.msra.mxu0 0
        %1647 = vmatprep.subr.bf16.mxu0 0
        %1648 = vmatpush1.bf16.msra.mxu0 0
        %1649 = vmatprep.subr.bf16.mxu0 0
        %1650 = vmatpush1.bf16.msra.mxu0 0
        %1651 = vmatprep.subr.bf16.mxu0 0
        %1652 = vmatpush1.bf16.msra.mxu0 0
        %1653 = vmatprep.subr.bf16.mxu0 0
        %1654 = vmatpush1.bf16.msra.mxu0 0
        %1655 = vmatprep.subr.bf16.mxu0 0
        %1656 = vmatpush1.bf16.msra.mxu0 0
        %1657 = vmatprep.subr.bf16.mxu0 0
        %1658 = vmatpush1.bf16.msra.mxu0 0
        %1659 = vmatprep.subr.bf16.mxu0 0
        %1660 = vmatpush1.bf16.msra.mxu0 0
        %1661 = vmatprep.subr.bf16.mxu0 0
        %1662 = vmatpush1.bf16.msra.mxu0 0
        %1663 = vmatprep.subr.bf16.mxu0 0
        %1664 = vmatpush1.bf16.msra.mxu0 0
        %1665 = vmatprep.subr.bf16.mxu0 0
        %1666 = vmatpush1.bf16.msra.mxu0 0
        %1667 = vmatprep.mubr.bf16.mxu0 0
        %1668 = vmatmul.mubr.bf16.gmra.mrb[0].mxu0 %v1633
        %v1669 = vpop.f32.mrb[0].mxu0
        %v1670 = vadd.f32 0.0, %v1669
        %v1671 = vpop.f32.mrb[0].mxu0
        %v1672 = vpop.f32.mrb[0].mxu0
        %v1673 = vpop.f32.mrb[0].mxu0
        %1674 = vdwg.mxu0
        %v1675 = vpack.c.bf16 %v1670, %v1670
        %v1676 = vld [vmem:[#allocation18 + $0xc] sm:$0xf]
        %v1678 = vsel %vm1097, %v1675, 0
        %v1681 = vsel %vm1205, %v1676, 0
        %1683 = vmatprep.subr.bf16.mxu0 0
        %1684 = vmatpush1.bf16.msra.mxu0 %v1681
        %1685 = vmatprep.subr.bf16.mxu0 0
        %1686 = vmatpush1.bf16.msra.mxu0 0
        %1687 = vmatprep.subr.bf16.mxu0 0
        %1688 = vmatpush1.bf16.msra.mxu0 0
        %1689 = vmatprep.subr.bf16.mxu0 0
        %1690 = vmatpush1.bf16.msra.mxu0 0
        %1691 = vmatprep.subr.bf16.mxu0 0
        %1692 = vmatpush1.bf16.msra.mxu0 0
        %1693 = vmatprep.subr.bf16.mxu0 0
        %1694 = vmatpush1.bf16.msra.mxu0 0
        %1695 = vmatprep.subr.bf16.mxu0 0
        %1696 = vmatpush1.bf16.msra.mxu0 0
        %1697 = vmatprep.subr.bf16.mxu0 0
        %1698 = vmatpush1.bf16.msra.mxu0 0
        %1699 = vmatprep.subr.bf16.mxu0 0
        %1700 = vmatpush1.bf16.msra.mxu0 0
        %1701 = vmatprep.subr.bf16.mxu0 0
        %1702 = vmatpush1.bf16.msra.mxu0 0
        %1703 = vmatprep.subr.bf16.mxu0 0
        %1704 = vmatpush1.bf16.msra.mxu0 0
        %1705 = vmatprep.subr.bf16.mxu0 0
        %1706 = vmatpush1.bf16.msra.mxu0 0
        %1707 = vmatprep.subr.bf16.mxu0 0
        %1708 = vmatpush1.bf16.msra.mxu0 0
        %1709 = vmatprep.subr.bf16.mxu0 0
        %1710 = vmatpush1.bf16.msra.mxu0 0
        %1711 = vmatprep.subr.bf16.mxu0 0
        %1712 = vmatpush1.bf16.msra.mxu0 0
        %1713 = vmatprep.subr.bf16.mxu0 0
        %1714 = vmatpush1.bf16.msra.mxu0 0
        %1715 = vmatprep.mubr.bf16.mxu0 0
        %1716 = vmatmul.mubr.bf16.gmra.mrb[0].mxu0 %v1678
        %v1717 = vpop.f32.mrb[0].mxu0
        %v1718 = vadd.f32 0.0, %v1717
        %v1719 = vpop.f32.mrb[0].mxu0
        %v1720 = vpop.f32.mrb[0].mxu0
        %v1721 = vpop.f32.mrb[0].mxu0
        %1722 = vdwg.mxu0
        %v1723 = vadd.f32 %v1566, %v1718
        %v1724 = vadd.f32 %v1014, %v1723
        %v1725 = vsel %vm1042, %v1724, 0.0
        %1726 = vadd.xlane.f32.xlu0 %v1725
        %v1727 = vpop.xlane.xlu0 %1726
        %v1728 = vrcp.pop 32.0
        %v1729 = vmul.f32 %v1727, %v1728
        %v1730 = vsub.f32 %v1724, %v1729
        %v1731 = vmul.f32 %v1730, %v1730
        %v1732 = vsel %vm1042, %v1731, 0.0
        %1733 = vadd.xlane.f32.xlu0 %v1732
        %v1734 = vpop.xlane.xlu0 %1733
        %v1735 = vmul.f32 %v1734, %v1728
        %v1736 = vadd.f32 %v1735, 1e-05
        %v1737 = vrsqrt.pop %v1736
        %v1738 = vmul.f32 %v1730, %v1737
        %v1739 = vld [vmem:[#allocation27] sm:$0x1]
        %v1741 = vlaneseq
        %v1742 = vshrl.u32 %v1741, 7
        %v1743 = vsub.s32 0, %v1742
        %v1744 = vrot.slane %v1739, %v1743
        %v1746 = vmul.f32 %v1738, %v1744
        %v1747 = vld [vmem:[#allocation28] sm:$0x1]
        %v1749 = vlaneseq
        %v1750 = vshrl.u32 %v1749, 7
        %v1751 = vsub.s32 0, %v1750
        %v1752 = vrot.slane %v1747, %v1751
        %v1754 = vadd.f32 %v1746, %v1752
        %v1755 = vpack.c.bf16 %v1754, %v1754
        %v1756 = vld [vmem:[#allocation21] sm:$0xf]
        %v1757 = vld [vmem:[#allocation21 + $0x4] sm:$0xf]
        %v1758 = vld [vmem:[#allocation21 + $0x8] sm:$0xf]
        %v1759 = vld [vmem:[#allocation21 + $0xc] sm:$0xf]
        %v1760 = vld [vmem:[#allocation22] sm:$0x1]
        %v1762 = vlaneseq
        %v1763 = vshrl.u32 %v1762, 7
        %v1764 = vsub.s32 0, %v1763
        %v1765 = vrot.slane %v1760, %v1764
        %v1771 = vunpack.c.l.b16 %v1756
        %v1772 = vunpack.c.l.b16 %v1757
        %v1773 = vunpack.c.l.b16 %v1758
        %v1774 = vunpack.c.l.b16 %v1759
        %v1775 = vpack.c.b16 %v1772, %v1771
        %v1776 = vpack.c.b16 %v1774, %v1773
        %v1780 = vsel %vm1042, %v1755, 0
        %1782 = vmatprep.subr.bf16.mxu0 0
        %1783 = vmatpush1.bf16.msra.mxu0 %v1775
        %1784 = vmatprep.subr.bf16.mxu0 0
        %1785 = vmatpush1.bf16.msra.mxu0 %v1776
        %1786 = vmatprep.subr.bf16.mxu0 0
        %1787 = vmatpush1.bf16.msra.mxu0 0
        %1788 = vmatprep.subr.bf16.mxu0 0
        %1789 = vmatpush1.bf16.msra.mxu0 0
        %1790 = vmatprep.subr.bf16.mxu0 0
        %1791 = vmatpush1.bf16.msra.mxu0 0
        %1792 = vmatprep.subr.bf16.mxu0 0
        %1793 = vmatpush1.bf16.msra.mxu0 0
        %1794 = vmatprep.subr.bf16.mxu0 0
        %1795 = vmatpush1.bf16.msra.mxu0 0
        %1796 = vmatprep.subr.bf16.mxu0 0
        %1797 = vmatpush1.bf16.msra.mxu0 0
        %1798 = vmatprep.subr.bf16.mxu0 0
        %1799 = vmatpush1.bf16.msra.mxu0 0
        %1800 = vmatprep.subr.bf16.mxu0 0
        %1801 = vmatpush1.bf16.msra.mxu0 0
        %1802 = vmatprep.subr.bf16.mxu0 0
        %1803 = vmatpush1.bf16.msra.mxu0 0
        %1804 = vmatprep.subr.bf16.mxu0 0
        %1805 = vmatpush1.bf16.msra.mxu0 0
        %1806 = vmatprep.subr.bf16.mxu0 0
        %1807 = vmatpush1.bf16.msra.mxu0 0
        %1808 = vmatprep.subr.bf16.mxu0 0
        %1809 = vmatpush1.bf16.msra.mxu0 0
        %1810 = vmatprep.subr.bf16.mxu0 0
        %1811 = vmatpush1.bf16.msra.mxu0 0
        %1812 = vmatprep.subr.bf16.mxu0 0
        %1813 = vmatpush1.bf16.msra.mxu0 0
        %1814 = vmatprep.mubr.bf16.mxu0 0
        %1815 = vmatmul.mubr.bf16.gmra.mrb[0].mxu0 %v1780
        %v1816 = vpop.f32.mrb[0].mxu0
        %v1817 = vadd.f32 %v1765, %v1816
        %v1818 = vpop.f32.mrb[0].mxu0
        %v1819 = vpop.f32.mrb[0].mxu0
        %v1820 = vpop.f32.mrb[0].mxu0
        %1821 = vdwg.mxu0
        %v1822 = vmax.f32 %v1817, 0.0
        %v1823 = vpack.c.bf16 %v1822, %v1822
        %v1824 = vld [vmem:[#allocation24] sm:$0xf]
        %v1825 = vld [vmem:[#allocation24 + $0x4] sm:$0xf]
        %v1826 = vld [vmem:[#allocation24 + $0x8] sm:$0xf]
        %v1827 = vld [vmem:[#allocation24 + $0xc] sm:$0xf]
        %v1828 = vld [vmem:[#allocation24 + $0x10] sm:$0xf]
        %v1829 = vld [vmem:[#allocation24 + $0x14] sm:$0xf]
        %v1830 = vld [vmem:[#allocation24 + $0x18] sm:$0xf]
        %v1831 = vld [vmem:[#allocation24 + $0x1c] sm:$0xf]
        %v1832 = vld [vmem:[#allocation25] sm:$0x1]
        %v1834 = vlaneseq
        %v1835 = vshrl.u32 %v1834, 7
        %v1836 = vsub.s32 0, %v1835
        %v1837 = vrot.slane %v1832, %v1836
        %v1847 = vunpack.c.l.b16 %v1824
        %v1848 = vunpack.c.l.b16 %v1825
        %v1849 = vunpack.c.l.b16 %v1826
        %v1850 = vunpack.c.l.b16 %v1827
        %v1851 = vunpack.c.l.b16 %v1828
        %v1852 = vunpack.c.l.b16 %v1829
        %v1853 = vunpack.c.l.b16 %v1830
        %v1854 = vunpack.c.l.b16 %v1831
        %v1855 = vpack.c.b16 %v1848, %v1847
        %v1856 = vpack.c.b16 %v1850, %v1849
        %v1857 = vpack.c.b16 %v1852, %v1851
        %v1858 = vpack.c.b16 %v1854, %v1853
        %vm1863 = vcmask 523264
        %v1865 = vsel %vm1863, %v1823, 0
        %1867 = vmatprep.subr.bf16.mxu0 0
        %1868 = vmatpush1.bf16.msra.mxu0 %v1855
        %1869 = vmatprep.subr.bf16.mxu0 0
        %1870 = vmatpush1.bf16.msra.mxu0 %v1856
        %1871 = vmatprep.subr.bf16.mxu0 0
        %1872 = vmatpush1.bf16.msra.mxu0 %v1857
        %1873 = vmatprep.subr.bf16.mxu0 0
        %1874 = vmatpush1.bf16.msra.mxu0 %v1858
        %1875 = vmatprep.subr.bf16.mxu0 0
        %1876 = vmatpush1.bf16.msra.mxu0 0
        %1877 = vmatprep.subr.bf16.mxu0 0
        %1878 = vmatpush1.bf16.msra.mxu0 0
        %1879 = vmatprep.subr.bf16.mxu0 0
        %1880 = vmatpush1.bf16.msra.mxu0 0
        %1881 = vmatprep.subr.bf16.mxu0 0
        %1882 = vmatpush1.bf16.msra.mxu0 0
        %1883 = vmatprep.subr.bf16.mxu0 0
        %1884 = vmatpush1.bf16.msra.mxu0 0
        %1885 = vmatprep.subr.bf16.mxu0 0
        %1886 = vmatpush1.bf16.msra.mxu0 0
        %1887 = vmatprep.subr.bf16.mxu0 0
        %1888 = vmatpush1.bf16.msra.mxu0 0
        %1889 = vmatprep.subr.bf16.mxu0 0
        %1890 = vmatpush1.bf16.msra.mxu0 0
        %1891 = vmatprep.subr.bf16.mxu0 0
        %1892 = vmatpush1.bf16.msra.mxu0 0
        %1893 = vmatprep.subr.bf16.mxu0 0
        %1894 = vmatpush1.bf16.msra.mxu0 0
        %1895 = vmatprep.subr.bf16.mxu0 0
        %1896 = vmatpush1.bf16.msra.mxu0 0
        %1897 = vmatprep.subr.bf16.mxu0 0
        %1898 = vmatpush1.bf16.msra.mxu0 0
        %1899 = vmatprep.mubr.bf16.mxu0 0
        %1900 = vmatmul.mubr.bf16.gmra.mrb[0].mxu0 %v1865
        %v1901 = vpop.f32.mrb[0].mxu0
        %v1902 = vadd.f32 %v1837, %v1901
        %v1903 = vpop.f32.mrb[0].mxu0
        %v1904 = vpop.f32.mrb[0].mxu0
        %v1905 = vpop.f32.mrb[0].mxu0
        %1906 = vdwg.mxu0
        %v1907 = vadd.f32 %v1754, %v1902
        %v1908 = vsel %vm1042, %v1907, 0.0
        %1909 = vadd.xlane.f32.xlu0 %v1908
        %v1910 = vpop.xlane.xlu0 %1909
        %v1911 = vmul.f32 %v1910, %v1728
        %v1912 = vsub.f32 %v1907, %v1911
        %v1913 = vmul.f32 %v1912, %v1912
        %v1914 = vsel %vm1042, %v1913, 0.0
        %1915 = vadd.xlane.f32.xlu0 %v1914
        %v1916 = vpop.xlane.xlu0 %1915
        %v1917 = vmul.f32 %v1916, %v1728
        %v1918 = vadd.f32 %v1917, 1e-05
        %v1919 = vrsqrt.pop %v1918
        %v1920 = vmul.f32 %v1912, %v1919
        %v1921 = vld [vmem:[#allocation30] sm:$0x1]
        %v1923 = vlaneseq
        %v1924 = vshrl.u32 %v1923, 7
        %v1925 = vsub.s32 0, %v1924
        %v1926 = vrot.slane %v1921, %v1925
        %v1928 = vmul.f32 %v1920, %v1926
        %v1929 = vld [vmem:[#allocation31] sm:$0x1]
        %v1931 = vlaneseq
        %v1932 = vshrl.u32 %v1931, 7
        %v1933 = vsub.s32 0, %v1932
        %v1934 = vrot.slane %v1929, %v1933
        %v1936 = vadd.f32 %v1928, %v1934
        %1937 = vst.msk [vmem:[%s859] sm:$0xff] %vm1042, %v1936
        %s1938 = sand.u32 %s456, 1
        %s1939 = scalar_lea.sflag [#allocation6], %s1938
        %s1940 = sand.u32 %s456, 1
        %s1941 = smul.addr %s1940, 8
        %s1942 = scalar_lea.vmem [#allocation33], %s1941
        // Predicated region
        $region169: #{tpu_custom_call.1} parent=91 // pred_check
          %p1943 = pneg %p466
        $region170: #{tpu_custom_call.1} parent=91 // pred_check_branch
          %1945 = sbr.rel (%p1943) target = $region172
        $region171: #{tpu_custom_call.1} parent=91 // pred_region
          %s1947 = ssub.s32 128, 128
          %1948 = vsyncadd %s1939, %s1947
          %s1949 = smul.addr %s50, 2
          %s1950 = sadd.s32 %s51, %s1949
          %s1951 = smul.addr %s1950, 128
          %s1952 = scalar_lea.hbm %s18, %s1951
          %s1954 = sshll.u32 %s1942, 4
          %s1955 = int_to_ptr.vmem [resolvable:$true] %s1954
          %1957 = dma.vmem_to_hbm [thread:$0]  %s1955, 128, %s1952, %s1939
        $region172: #{tpu_custom_call.1} parent=91 // pred_fallthru
          _
      $region92: #{tpu_custom_call.1} parent=5 // pred_fallthru
        _
      %p1958 = scmp.le.s32.totalorder 2, %s41
      // Predicated region
      $region173: #{tpu_custom_call.1} parent=5 // pred_check
        %p1959 = pneg %p1958
      $region174: #{tpu_custom_call.1} parent=5 // pred_check_branch
        %1961 = sbr.rel (%p1959) target = $region176
      $region175: #{tpu_custom_call.1} parent=5 // pred_region
        %s1962 = ssub.s32 %s41, 2
        // Predicated region
        $region177: #{tpu_custom_call.1} parent=175 // pred_check
          %p1963 = pneg %p472
        $region178: #{tpu_custom_call.1} parent=175 // pred_check_branch
          %1965 = sbr.rel (%p1963) target = $region180
        $region179: #{tpu_custom_call.1} parent=175 // pred_region
          %s1966 = sand.u32 %s457, 1
          %s1967 = scalar_lea.sflag [#allocation6], %s1966
          %s1968 = sand.u32 %s457, 1
          %s1969 = smul.addr %s1968, 8
          %s1970 = scalar_lea.vmem [#allocation33], %s1969
          %1971 = dma.done %s1967, 128
        $region180: #{tpu_custom_call.1} parent=175 // pred_fallthru
          _
      $region176: #{tpu_custom_call.1} parent=5 // pred_fallthru
        _
    $region6: #{tpu_custom_call.1} parent=1 // loop_footer
      %s45 = sadd.s32 1, %s41
    $region7: #{tpu_custom_call.1} parent=1 // loop_footer_branch
      %40 = sbr.rel target = $region3
    $region8: #{tpu_custom_call.1} parent=1 // loop_exit
      _
    %1972 = vsyncpa [#allocation5], 1
    %s1973 = scalar_lea.sflag [#allocation5], 1
    %1974 = vsyncpa %s1973, 1
    %1975 = vsyncpa [#allocation8], 1
    %s1976 = scalar_lea.sflag [#allocation8], 1
    %1977 = vsyncpa %s1976, 1
    %1978 = vsyncpa [#allocation11], 1
    %1979 = vsyncpa [#allocation14], 1
    %1980 = vsyncpa [#allocation17], 1
    %1981 = vsyncpa [#allocation20], 1
    %1982 = vsyncpa [#allocation23], 1
    %1983 = vsyncpa [#allocation26], 1
    %1984 = vsyncpa [#allocation29], 1
    %1985 = vsyncpa [#allocation32], 1
    %1986 = vsyncpa [#allocation6], 1
    %s1987 = scalar_lea.sflag [#allocation6], 1
    %1988 = vsyncpa %s1987, 1

</llo_original>
